<compile_context>
chip_gen: v7x
topology: tpu7x:2x2x1
jax: 0.10.0
libtpu: 0.0.40
codegen_flags: <defaults>
</compile_context>

<pallas_src>
import math

import jax
import jax.numpy as jnp
from jax.experimental import pallas as pl
from jax.experimental.pallas import tpu as pltpu

K1 = 784       # 28*28, unpadded contraction dim (MXU pads internally)
N1_PAD = 512   # 500 -> 4 * 128
N2 = 256       # already lane-aligned
N3_PAD = 128   # 10  -> 128


def _round_up(n, m):
    return ((n + m - 1) // m) * m


def mlp_kernel(x_ref, w1_ref, b1_ref, w2_ref, b2_ref, w3_ref, b3_ref, o_ref):
    # x_ref: (tb, 784) f32; w1: (784, 512) bf16; w2: (512, 256) bf16;
    # w3: (256, 128) bf16; biases f32; o_ref: (tb, 128) f32.
    x = x_ref[...].astype(jnp.bfloat16)          # VPU cast, hides under MXU work

    h1 = jnp.dot(x, w1_ref[...], preferred_element_type=jnp.float32)
    h1 = jnp.maximum(h1 + b1_ref[...], 0.0)      # relu(fc1(x)); bias+relu in f32
    h1 = h1.astype(jnp.bfloat16)

    h2 = jnp.dot(h1, w2_ref[...], preferred_element_type=jnp.float32)
    h2 = jnp.maximum(h2 + b2_ref[...], 0.0)      # relu(fc2(x))
    h2 = h2.astype(jnp.bfloat16)

    y = jnp.dot(h2, w3_ref[...], preferred_element_type=jnp.float32) + b3_ref[...]
    o_ref[...] = y.astype(o_ref.dtype)           # fc3(x), no activation


def prepare_params(params):
    """One-time lane padding + bf16 cast of weights (hoisted out of forward).

    Zero padding is inert: padded hidden lanes produce relu(0)=0 which feed
    zero rows of the next weight, and padded output lanes are sliced off.
    """
    w1, b1, w2, b2, w3, b3 = params
    bf = jnp.bfloat16
    w1p = jnp.zeros((K1, N1_PAD), bf).at[:, :500].set(w1.astype(bf))
    b1p = jnp.zeros((1, N1_PAD), jnp.float32).at[:, :500].set(b1.reshape(1, 500))
    w2p = jnp.zeros((N1_PAD, N2), bf).at[:500, :].set(w2.astype(bf))
    b2p = b2.reshape(1, N2).astype(jnp.float32)
    w3p = jnp.zeros((N2, N3_PAD), bf).at[:, :10].set(w3.astype(bf))
    b3p = jnp.zeros((1, N3_PAD), jnp.float32).at[:, :10].set(b3.reshape(1, 10))
    return (w1p, b1p, w2p, b2p, w3p, b3p)


def _choose_tiling(B, batch_tile):
    """Pick a batch tile (multiple of 128) and padded batch size.

    Keeps >= 2 grid steps whenever B > 128 so the "parallel" batch axis can be
    sharded across v7x's two TensorCores, while growing tiles toward
    `batch_tile` so the ~0.35 us per-step overhead stays amortized (v6e).
    """
    tb_cap = max(128, _round_up(batch_tile, 128))     # defensive 128-rounding
    b128 = _round_up(max(B, 1), 128)
    n128 = b128 // 128
    min_steps = 2 if n128 >= 2 else 1
    tb = min(tb_cap, 128 * pl.cdiv(n128, min_steps))
    B_pad = _round_up(b128, tb)
    return tb, B_pad


def mlp_forward(x_nchw, prepared_params, *, batch_tile=1024):
    """x_nchw: (B, 1, 28, 28) float32. prepared_params: from prepare_params().

    Returns logits (B, 10) float32.  batch_tile=1024 is safe on v5e/v6e/v7x
    under the 32 MiB scoped-VMEM limit set below; v6e can pass 2048.
    """
    w1p, b1p, w2p, b2p, w3p, b3p = prepared_params
    B = x_nchw.shape[0]
    x = x_nchw.reshape(B, K1).astype(jnp.float32)     # == torch view(-1, 784)

    tb, B_pad = _choose_tiling(B, batch_tile)
    grid = (B_pad // tb,)
    if B_pad != B:
        x = jnp.pad(x, ((0, B_pad - B), (0, 0)))      # rows only; zeros are inert

    full = lambda i: (0, 0)   # weights/biases: same full block every grid step

    flops = 2 * B_pad * (K1 * N1_PAD + N1_PAD * N2 + N2 * N3_PAD)
    bytes_accessed = (
        B_pad * K1 * 4                                        # x (f32)
        + (K1 * N1_PAD + N1_PAD * N2 + N2 * N3_PAD) * 2       # weights (bf16)
        + (N1_PAD + N2 + N3_PAD) * 4                          # biases (f32)
        + B_pad * N3_PAD * 4                                  # out (f32)
    )

    out = pl.pallas_call(
        mlp_kernel,
        out_shape=jax.ShapeDtypeStruct((B_pad, N3_PAD), jnp.float32),
        grid_spec=pltpu.PrefetchScalarGridSpec(
            num_scalar_prefetch=0,
            grid=grid,
            in_specs=[
                pl.BlockSpec((tb, K1), lambda i: (i, 0)),     # x tile over batch
                pl.BlockSpec((K1, N1_PAD), full),             # w1 (resident)
                pl.BlockSpec((1, N1_PAD), full),              # b1
                pl.BlockSpec((N1_PAD, N2), full),             # w2
                pl.BlockSpec((1, N2), full),                  # b2
                pl.BlockSpec((N2, N3_PAD), full),             # w3
                pl.BlockSpec((1, N3_PAD), full),              # b3
            ],
            out_specs=pl.BlockSpec((tb, N3_PAD), lambda i: (i, 0)),
        ),
        compiler_params=pltpu.CompilerParams(
            dimension_semantics=("parallel",),
            vmem_limit_bytes=32 * 1024 * 1024,
        ),
        cost_estimate=pl.CostEstimate(
            flops=flops, transcendentals=0, bytes_accessed=bytes_accessed),
    )(x, w1p, b1p, w2p, b2p, w3p, b3p)

    # Drop batch padding and the padded output lanes.
    return out[:B, :10]


def init_linear(key, fan_in, fan_out):
    """Deterministic init mirroring nn.Linear defaults (kaiming_uniform a=sqrt(5))."""
    kw, kb = jax.random.split(key)
    bound = 1.0 / math.sqrt(fan_in)
    # stored as (in, out) i.e. already transposed relative to torch's (out, in)
    w = jax.random.uniform(kw, (fan_in, fan_out), jnp.float32, -bound, bound)
    b = jax.random.uniform(kb, (1, fan_out), jnp.float32, -bound, bound)
    return w, b


def init_params(key):
    k1, k2, k3 = jax.random.split(key, 3)
    w1, b1 = init_linear(k1, 28 * 28, 500)
    w2, b2 = init_linear(k2, 500, 256)
    w3, b3 = init_linear(k3, 256, 10)
    return (w1, b1, w2, b2, w3, b3)


if __name__ == "__main__":
    key = jax.random.PRNGKey(0)
    kp, kx = jax.random.split(key)

    params = init_params(kp)
    prepared = prepare_params(params)          # one-time weight prep

    # MNIST-like input: NCHW (B, 1, 28, 28), small batch for the smoke test.
    B = 8
    x = jax.random.normal(kx, (B, 1, 28, 28), jnp.float32)

    logits = mlp_forward(x, prepared)
    logits = jax.block_until_ready(logits)
    assert logits.shape == (B, 10)

    # Sanity: pure-JAX reference using the same bf16-operand / f32-accumulate
    # math as the kernel (zero padding is exact; only accumulation order differs).
    w1, b1, w2, b2, w3, b3 = params
    xf = x.reshape(B, 28 * 28)
    bf = jnp.bfloat16
    h1 = jnp.maximum(
        jnp.dot(xf.astype(bf), w1.astype(bf), preferred_element_type=jnp.float32) + b1, 0.0)
    h2 = jnp.maximum(
        jnp.dot(h1.astype(bf), w2.astype(bf), preferred_element_type=jnp.float32) + b2, 0.0)
    ref = jnp.dot(h2.astype(bf), w3.astype(bf), preferred_element_type=jnp.float32) + b3
    assert jnp.allclose(logits, ref, atol=2e-2, rtol=2e-2), (
        float(jnp.max(jnp.abs(logits - ref))))

    # Loose check against the full-f32 PyTorch-equivalent forward (bf16 matmul
    # operands cost ~1e-2 absolute error at these magnitudes).
    r1 = jnp.maximum(xf @ w1 + b1, 0.0)
    r2 = jnp.maximum(r1 @ w2 + b2, 0.0)
    ref_f32 = r2 @ w3 + b3
    assert jnp.allclose(logits, ref_f32, atol=1e-1, rtol=1e-1)

    print("KERNEL_OK")
</pallas_src>

<mosaic_0001>
module attributes {stable_mosaic.version = 11 : i64} {
  func.func @mlp_kernel(%arg0: i32, %arg1: memref<128x784xf32, #tpu.memory_space<vmem>>, %arg2: memref<784x512xbf16, #tpu.memory_space<vmem>>, %arg3: memref<1x512xf32, #tpu.memory_space<vmem>>, %arg4: memref<512x256xbf16, #tpu.memory_space<vmem>>, %arg5: memref<1x256xf32, #tpu.memory_space<vmem>>, %arg6: memref<256x128xbf16, #tpu.memory_space<vmem>>, %arg7: memref<1x128xf32, #tpu.memory_space<vmem>>, %arg8: memref<128x128xf32, #tpu.memory_space<vmem>>) attributes {dimension_semantics = [#tpu.dimension_semantics<parallel>], iteration_bounds = array<i64: 1>, scalar_prefetch = 0 : i64, scratch_operands = 0 : i64, tpu.core_type = #tpu.core_type<tc>, window_params = [{transform_indices = @transform_0, window_bounds = array<i64: 128, 784>}, {pipeline_mode = #tpu.pipeline_mode<synchronous>, transform_indices = @transform_1, window_bounds = array<i64: 784, 512>}, {pipeline_mode = #tpu.pipeline_mode<synchronous>, transform_indices = @transform_2, window_bounds = array<i64: 1, 512>}, {pipeline_mode = #tpu.pipeline_mode<synchronous>, transform_indices = @transform_3, window_bounds = array<i64: 512, 256>}, {pipeline_mode = #tpu.pipeline_mode<synchronous>, transform_indices = @transform_4, window_bounds = array<i64: 1, 256>}, {pipeline_mode = #tpu.pipeline_mode<synchronous>, transform_indices = @transform_5, window_bounds = array<i64: 256, 128>}, {pipeline_mode = #tpu.pipeline_mode<synchronous>, transform_indices = @transform_6, window_bounds = array<i64: 1, 128>}, {transform_indices = @transform_7, window_bounds = array<i64: 128, 128>}]} {
    %c0 = arith.constant 0 : index
    %c0_0 = arith.constant 0 : index
    %0 = vector.load %arg1[%c0, %c0_0] : memref<128x784xf32, #tpu.memory_space<vmem>>, vector<128x784xf32>
    %1 = arith.truncf %0 : vector<128x784xf32> to vector<128x784xbf16>
    %c0_1 = arith.constant 0 : index
    %c0_2 = arith.constant 0 : index
    %2 = vector.load %arg2[%c0_1, %c0_2] : memref<784x512xbf16, #tpu.memory_space<vmem>>, vector<784x512xbf16>
    %cst = arith.constant dense<0.000000e+00> : vector<128x512xf32>
    %3 = tpu.matmul %1, %2, %cst {dimension_numbers = #tpu.dot_dimension_numbers<[1], [0], [0], [1], [0, 0, 1, 1], [], []>} : vector<128x784xbf16>, vector<784x512xbf16>, vector<128x512xf32> -> vector<128x512xf32>
    %c0_3 = arith.constant 0 : index
    %c0_4 = arith.constant 0 : index
    %4 = vector.load %arg3[%c0_3, %c0_4] : memref<1x512xf32, #tpu.memory_space<vmem>>, vector<1x512xf32>
    %5 = vector.broadcast %4 : vector<1x512xf32> to vector<128x512xf32>
    %6 = arith.addf %3, %5 : vector<128x512xf32>
    %cst_5 = arith.constant 0.000000e+00 : f32
    %7 = vector.broadcast %cst_5 : f32 to vector<128x512xf32>
    %8 = arith.maximumf %6, %7 : vector<128x512xf32>
    %9 = arith.truncf %8 : vector<128x512xf32> to vector<128x512xbf16>
    %c0_6 = arith.constant 0 : index
    %c0_7 = arith.constant 0 : index
    %10 = vector.load %arg4[%c0_6, %c0_7] : memref<512x256xbf16, #tpu.memory_space<vmem>>, vector<512x256xbf16>
    %cst_8 = arith.constant dense<0.000000e+00> : vector<128x256xf32>
    %11 = tpu.matmul %9, %10, %cst_8 {dimension_numbers = #tpu.dot_dimension_numbers<[1], [0], [0], [1], [0, 0, 1, 1], [], []>} : vector<128x512xbf16>, vector<512x256xbf16>, vector<128x256xf32> -> vector<128x256xf32>
    %c0_9 = arith.constant 0 : index
    %c0_10 = arith.constant 0 : index
    %12 = vector.load %arg5[%c0_9, %c0_10] : memref<1x256xf32, #tpu.memory_space<vmem>>, vector<1x256xf32>
    %13 = vector.broadcast %12 : vector<1x256xf32> to vector<128x256xf32>
    %14 = arith.addf %11, %13 : vector<128x256xf32>
    %cst_11 = arith.constant 0.000000e+00 : f32
    %15 = vector.broadcast %cst_11 : f32 to vector<128x256xf32>
    %16 = arith.maximumf %14, %15 : vector<128x256xf32>
    %17 = arith.truncf %16 : vector<128x256xf32> to vector<128x256xbf16>
    %c0_12 = arith.constant 0 : index
    %c0_13 = arith.constant 0 : index
    %18 = vector.load %arg6[%c0_12, %c0_13] : memref<256x128xbf16, #tpu.memory_space<vmem>>, vector<256x128xbf16>
    %cst_14 = arith.constant dense<0.000000e+00> : vector<128x128xf32>
    %19 = tpu.matmul %17, %18, %cst_14 {dimension_numbers = #tpu.dot_dimension_numbers<[1], [0], [0], [1], [0, 0, 1, 1], [], []>} : vector<128x256xbf16>, vector<256x128xbf16>, vector<128x128xf32> -> vector<128x128xf32>
    %c0_15 = arith.constant 0 : index
    %c0_16 = arith.constant 0 : index
    %20 = vector.load %arg7[%c0_15, %c0_16] : memref<1x128xf32, #tpu.memory_space<vmem>>, vector<1x128xf32>
    %21 = vector.broadcast %20 : vector<1x128xf32> to vector<128x128xf32>
    %22 = arith.addf %19, %21 : vector<128x128xf32>
    %c0_17 = arith.constant 0 : index
    %c0_18 = arith.constant 0 : index
    %23 = vector.load %arg8[%c0_17, %c0_18] : memref<128x128xf32, #tpu.memory_space<vmem>>, vector<128x128xf32>
    tpu.vector_store %arg8[%c0_17, %c0_18], %22 {strides = array<i32>} : memref<128x128xf32, #tpu.memory_space<vmem>>, vector<128x128xf32>,
    return
  }
  func.func @transform_0(%arg0: i32) -> (i32, i32) {
    %c0_i32 = arith.constant 0 : i32
    %c0_i32_0 = arith.constant 0 : i32
    return %arg0, %c0_i32 : i32, i32
  }
  func.func @transform_1(%arg0: i32) -> (i32, i32) {
    %c0_i32 = arith.constant 0 : i32
    %c0_i32_0 = arith.constant 0 : i32
    %c0_i32_1 = arith.constant 0 : i32
    return %c0_i32, %c0_i32_0 : i32, i32
  }
  func.func @transform_2(%arg0: i32) -> (i32, i32) {
    %c0_i32 = arith.constant 0 : i32
    %c0_i32_0 = arith.constant 0 : i32
    %c0_i32_1 = arith.constant 0 : i32
    return %c0_i32, %c0_i32_0 : i32, i32
  }
  func.func @transform_3(%arg0: i32) -> (i32, i32) {
    %c0_i32 = arith.constant 0 : i32
    %c0_i32_0 = arith.constant 0 : i32
    %c0_i32_1 = arith.constant 0 : i32
    return %c0_i32, %c0_i32_0 : i32, i32
  }
  func.func @transform_4(%arg0: i32) -> (i32, i32) {
    %c0_i32 = arith.constant 0 : i32
    %c0_i32_0 = arith.constant 0 : i32
    %c0_i32_1 = arith.constant 0 : i32
    return %c0_i32, %c0_i32_0 : i32, i32
  }
  func.func @transform_5(%arg0: i32) -> (i32, i32) {
    %c0_i32 = arith.constant 0 : i32
    %c0_i32_0 = arith.constant 0 : i32
    %c0_i32_1 = arith.constant 0 : i32
    return %c0_i32, %c0_i32_0 : i32, i32
  }
  func.func @transform_6(%arg0: i32) -> (i32, i32) {
    %c0_i32 = arith.constant 0 : i32
    %c0_i32_0 = arith.constant 0 : i32
    %c0_i32_1 = arith.constant 0 : i32
    return %c0_i32, %c0_i32_0 : i32, i32
  }
  func.func @transform_7(%arg0: i32) -> (i32, i32) {
    %c0_i32 = arith.constant 0 : i32
    %c0_i32_0 = arith.constant 0 : i32
    return %arg0, %c0_i32 : i32, i32
  }
}

</mosaic_0001>

<llo_original>
// kernel: tpu_custom_call.1
$region0: #{tpu_custom_call.1}
  #allocation0 [shape = 'u32[]', space=smem, size = 0x4, offset = 0x4, fixed_abs, tag = 'smem constant byte address 0x4 - core index']
  #allocation1 [shape = 'u32[144,128]{1,0:T(1,128)}', space=vmem, size = 0x12000, scoped, tag = 'internal scratch']
  %s0 = inlined_call_operand.vmem [shape: f32[128,784], index: 0, kind: input, shape index: {}]
  %s1 = inlined_call_operand.vmem [shape: bf16[784,512], index: 1, kind: input, shape index: {}]
  %s2 = inlined_call_operand.hbm [shape: f32[1,512], index: 2, kind: input, shape index: {}]
  %s3 = inlined_call_operand.hbm [shape: bf16[512,256], index: 3, kind: input, shape index: {}]
  %s4 = inlined_call_operand.vmem [shape: f32[1,256], index: 4, kind: input, shape index: {}]
  %s5 = inlined_call_operand.vmem [shape: bf16[256,128], index: 5, kind: input, shape index: {}]
  %s6 = inlined_call_operand.hbm [shape: f32[1,128], index: 6, kind: input, shape index: {}]
  %s7 = inlined_call_operand.hbm [shape: f32[128,128], index: 7, kind: output, shape index: {}]
  %s8 = sld [smem:[#allocation0]]
  $region50: #{tpu_custom_call.1} parent=0
    _
  %s10 = ssub.s32 1, %s8
  %s11 = scalar_select 0, %s10, %s8
  $region1: #{tpu_custom_call.1} parent=0
    #allocation2 [shape = 'u8[2048]{0}', space=vmem, size = 0x800, scoped, tag = 'input window, operand 2, single buffered']
    #allocation3 [shape = 's32[1]{0}', space=sflag, size = 0x4, scoped, tag = 'scoped memory for tpu_custom_call.1']
    #allocation4 [shape = 's32[1]{0}', space=sflag, size = 0x4, scoped, tag = 'scoped memory for tpu_custom_call.1']
    #allocation5 [shape = 'u8[262144]{0}', space=vmem, size = 0x40000, scoped, tag = 'input window, operand 3, single buffered']
    #allocation6 [shape = 's32[1]{0}', space=sflag, size = 0x4, scoped, tag = 'scoped memory for tpu_custom_call.1']
    #allocation7 [shape = 'u8[512]{0}', space=vmem, size = 0x400, scoped, tag = 'input window, operand 6, single buffered']
    #allocation8 [shape = 'u8[65536]{0}', space=vmem, size = 0x10000, scoped, tag = 'output window, operand 0, single buffered']
    %12 = vsyncpa [#allocation3], 0
    %13 = vsyncpa [#allocation6], 0
    %14 = vsyncpa [#allocation4], 0
    // Predicated region
    $region2: #{tpu_custom_call.1} parent=1 // pred_check
      _
    $region3: #{tpu_custom_call.1} parent=1 // pred_check_branch
      %16 = sbr.rel (0) target = $region5
    $region4: #{tpu_custom_call.1} parent=1 // pred_region
      _
    $region5: #{tpu_custom_call.1} parent=1 // pred_fallthru
      _
    // Predicated region
    $region6: #{tpu_custom_call.1} parent=1 // pred_check
      _
    $region7: #{tpu_custom_call.1} parent=1 // pred_check_branch
      %18 = sbr.rel (0) target = $region9
    $region8: #{tpu_custom_call.1} parent=1 // pred_region
      _
    $region9: #{tpu_custom_call.1} parent=1 // pred_fallthru
      _
    // Predicated region
    $region10: #{tpu_custom_call.1} parent=1 // pred_check
      _
    $region11: #{tpu_custom_call.1} parent=1 // pred_check_branch
      %20 = sbr.rel (0) target = $region13
    $region12: #{tpu_custom_call.1} parent=1 // pred_region
      %s22 = ssub.s32 64, 64
      %23 = vsyncadd [#allocation3], %s22
      %s25 = sshll.u32 [#allocation2], 4
      %s26 = int_to_ptr.vmem [resolvable:$true] %s25
      %28 = dma.hbm_to_vmem [thread:$0]  %s2, 64, %s26, [#allocation3]
    $region13: #{tpu_custom_call.1} parent=1 // pred_fallthru
      _
    // Predicated region
    $region14: #{tpu_custom_call.1} parent=1 // pred_check
      _
    $region15: #{tpu_custom_call.1} parent=1 // pred_check_branch
      %30 = sbr.rel (0) target = $region17
    $region16: #{tpu_custom_call.1} parent=1 // pred_region
      %s32 = ssub.s32 8192, 8192
      %33 = vsyncadd [#allocation6], %s32
      %s34 = sshll.u32 [#allocation5], 4
      %s35 = int_to_ptr.vmem [resolvable:$true] %s34
      %40 = dma.hbm_to_vmem [thread:$0]  %s3, 8192, %s35, [#allocation6], 128, 128, 8
    $region17: #{tpu_custom_call.1} parent=1 // pred_fallthru
      _
    // Predicated region
    $region18: #{tpu_custom_call.1} parent=1 // pred_check
      _
    $region19: #{tpu_custom_call.1} parent=1 // pred_check_branch
      %42 = sbr.rel (0) target = $region21
    $region20: #{tpu_custom_call.1} parent=1 // pred_region
      _
    $region21: #{tpu_custom_call.1} parent=1 // pred_fallthru
      _
    // Predicated region
    $region22: #{tpu_custom_call.1} parent=1 // pred_check
      _
    $region23: #{tpu_custom_call.1} parent=1 // pred_check_branch
      %44 = sbr.rel (0) target = $region25
    $region24: #{tpu_custom_call.1} parent=1 // pred_region
      _
    $region25: #{tpu_custom_call.1} parent=1 // pred_fallthru
      _
    // Predicated region
    $region26: #{tpu_custom_call.1} parent=1 // pred_check
      _
    $region27: #{tpu_custom_call.1} parent=1 // pred_check_branch
      %46 = sbr.rel (0) target = $region29
    $region28: #{tpu_custom_call.1} parent=1 // pred_region
      %s48 = ssub.s32 16, 16
      %49 = vsyncadd [#allocation6], %s48
      %s51 = sshll.u32 [#allocation7], 4
      %s52 = int_to_ptr.vmem [resolvable:$true] %s51
      %54 = dma.hbm_to_vmem [thread:$0]  %s6, 16, %s52, [#allocation6]
    $region29: #{tpu_custom_call.1} parent=1 // pred_fallthru
      _
    // Predicated region
    $region30: #{tpu_custom_call.1} parent=1 // pred_check
      _
    $region31: #{tpu_custom_call.1} parent=1 // pred_check_branch
      %56 = sbr.rel (0) target = $region33
    $region32: #{tpu_custom_call.1} parent=1 // pred_region
      %57 = dma.done [#allocation3], 64
    $region33: #{tpu_custom_call.1} parent=1 // pred_fallthru
      _
    // Predicated region
    $region34: #{tpu_custom_call.1} parent=1 // pred_check
      _
    $region35: #{tpu_custom_call.1} parent=1 // pred_check_branch
      %59 = sbr.rel (0) target = $region37
    $region36: #{tpu_custom_call.1} parent=1 // pred_region
      %60 = dma.done [#allocation6], 8192
    $region37: #{tpu_custom_call.1} parent=1 // pred_fallthru
      _
    // Predicated region
    $region38: #{tpu_custom_call.1} parent=1 // pred_check
      _
    $region39: #{tpu_custom_call.1} parent=1 // pred_check_branch
      %62 = sbr.rel (0) target = $region41
    $region40: #{tpu_custom_call.1} parent=1 // pred_region
      %63 = dma.done [#allocation6], 16
    $region41: #{tpu_custom_call.1} parent=1 // pred_fallthru
      _
    %v65 = vld [vmem:[%s0] sm:$0xff]
    %v66 = vld [vmem:[%s0 + $0x8] sm:$0xff]
    %v67 = vld [vmem:[%s0 + $0x10] sm:$0xff]
    %v68 = vld [vmem:[%s0 + $0x18] sm:$0xff]
    %v69 = vld [vmem:[%s0 + $0x20] sm:$0xff]
    %v70 = vld [vmem:[%s0 + $0x28] sm:$0xff]
    %v71 = vld [vmem:[%s0 + $0x30] sm:$0xff]
    %v72 = vld [vmem:[%s0 + $0x38] sm:$0xff]
    %v73 = vld [vmem:[%s0 + $0x40] sm:$0xff]
    %v74 = vld [vmem:[%s0 + $0x48] sm:$0xff]
    %v75 = vld [vmem:[%s0 + $0x50] sm:$0xff]
    %v76 = vld [vmem:[%s0 + $0x58] sm:$0xff]
    %v77 = vld [vmem:[%s0 + $0x60] sm:$0xff]
    %v78 = vld [vmem:[%s0 + $0x68] sm:$0xff]
    %v79 = vld [vmem:[%s0 + $0x70] sm:$0xff]
    %v80 = vld [vmem:[%s0 + $0x78] sm:$0xff]
    %v81 = vld [vmem:[%s0 + $0x80] sm:$0xff]
    %v82 = vld [vmem:[%s0 + $0x88] sm:$0xff]
    %v83 = vld [vmem:[%s0 + $0x90] sm:$0xff]
    %v84 = vld [vmem:[%s0 + $0x98] sm:$0xff]
    %v85 = vld [vmem:[%s0 + $0xa0] sm:$0xff]
    %v86 = vld [vmem:[%s0 + $0xa8] sm:$0xff]
    %v87 = vld [vmem:[%s0 + $0xb0] sm:$0xff]
    %v88 = vld [vmem:[%s0 + $0xb8] sm:$0xff]
    %v89 = vld [vmem:[%s0 + $0xc0] sm:$0xff]
    %v90 = vld [vmem:[%s0 + $0xc8] sm:$0xff]
    %v91 = vld [vmem:[%s0 + $0xd0] sm:$0xff]
    %v92 = vld [vmem:[%s0 + $0xd8] sm:$0xff]
    %v93 = vld [vmem:[%s0 + $0xe0] sm:$0xff]
    %v94 = vld [vmem:[%s0 + $0xe8] sm:$0xff]
    %v95 = vld [vmem:[%s0 + $0xf0] sm:$0xff]
    %v96 = vld [vmem:[%s0 + $0xf8] sm:$0xff]
    %v97 = vld [vmem:[%s0 + $0x100] sm:$0xff]
    %v98 = vld [vmem:[%s0 + $0x108] sm:$0xff]
    %v99 = vld [vmem:[%s0 + $0x110] sm:$0xff]
    %v100 = vld [vmem:[%s0 + $0x118] sm:$0xff]
    %v101 = vld [vmem:[%s0 + $0x120] sm:$0xff]
    %v102 = vld [vmem:[%s0 + $0x128] sm:$0xff]
    %v103 = vld [vmem:[%s0 + $0x130] sm:$0xff]
    %v104 = vld [vmem:[%s0 + $0x138] sm:$0xff]
    %v105 = vld [vmem:[%s0 + $0x140] sm:$0xff]
    %v106 = vld [vmem:[%s0 + $0x148] sm:$0xff]
    %v107 = vld [vmem:[%s0 + $0x150] sm:$0xff]
    %v108 = vld [vmem:[%s0 + $0x158] sm:$0xff]
    %v109 = vld [vmem:[%s0 + $0x160] sm:$0xff]
    %v110 = vld [vmem:[%s0 + $0x168] sm:$0xff]
    %v111 = vld [vmem:[%s0 + $0x170] sm:$0xff]
    %v112 = vld [vmem:[%s0 + $0x178] sm:$0xff]
    %v113 = vld [vmem:[%s0 + $0x180] sm:$0xff]
    %v114 = vld [vmem:[%s0 + $0x188] sm:$0xff]
    %v115 = vld [vmem:[%s0 + $0x190] sm:$0xff]
    %v116 = vld [vmem:[%s0 + $0x198] sm:$0xff]
    %v117 = vld [vmem:[%s0 + $0x1a0] sm:$0xff]
    %v118 = vld [vmem:[%s0 + $0x1a8] sm:$0xff]
    %v119 = vld [vmem:[%s0 + $0x1b0] sm:$0xff]
    %v120 = vld [vmem:[%s0 + $0x1b8] sm:$0xff]
    %v121 = vld [vmem:[%s0 + $0x1c0] sm:$0xff]
    %v122 = vld [vmem:[%s0 + $0x1c8] sm:$0xff]
    %v123 = vld [vmem:[%s0 + $0x1d0] sm:$0xff]
    %v124 = vld [vmem:[%s0 + $0x1d8] sm:$0xff]
    %v125 = vld [vmem:[%s0 + $0x1e0] sm:$0xff]
    %v126 = vld [vmem:[%s0 + $0x1e8] sm:$0xff]
    %v127 = vld [vmem:[%s0 + $0x1f0] sm:$0xff]
    %v128 = vld [vmem:[%s0 + $0x1f8] sm:$0xff]
    %v129 = vld [vmem:[%s0 + $0x200] sm:$0xff]
    %v130 = vld [vmem:[%s0 + $0x208] sm:$0xff]
    %v131 = vld [vmem:[%s0 + $0x210] sm:$0xff]
    %v132 = vld [vmem:[%s0 + $0x218] sm:$0xff]
    %v133 = vld [vmem:[%s0 + $0x220] sm:$0xff]
    %v134 = vld [vmem:[%s0 + $0x228] sm:$0xff]
    %v135 = vld [vmem:[%s0 + $0x230] sm:$0xff]
    %v136 = vld [vmem:[%s0 + $0x238] sm:$0xff]
    %v137 = vld [vmem:[%s0 + $0x240] sm:$0xff]
    %v138 = vld [vmem:[%s0 + $0x248] sm:$0xff]
    %v139 = vld [vmem:[%s0 + $0x250] sm:$0xff]
    %v140 = vld [vmem:[%s0 + $0x258] sm:$0xff]
    %v141 = vld [vmem:[%s0 + $0x260] sm:$0xff]
    %v142 = vld [vmem:[%s0 + $0x268] sm:$0xff]
    %v143 = vld [vmem:[%s0 + $0x270] sm:$0xff]
    %v144 = vld [vmem:[%s0 + $0x278] sm:$0xff]
    %v145 = vld [vmem:[%s0 + $0x280] sm:$0xff]
    %v146 = vld [vmem:[%s0 + $0x288] sm:$0xff]
    %v147 = vld [vmem:[%s0 + $0x290] sm:$0xff]
    %v148 = vld [vmem:[%s0 + $0x298] sm:$0xff]
    %v149 = vld [vmem:[%s0 + $0x2a0] sm:$0xff]
    %v150 = vld [vmem:[%s0 + $0x2a8] sm:$0xff]
    %v151 = vld [vmem:[%s0 + $0x2b0] sm:$0xff]
    %v152 = vld [vmem:[%s0 + $0x2b8] sm:$0xff]
    %v153 = vld [vmem:[%s0 + $0x2c0] sm:$0xff]
    %v154 = vld [vmem:[%s0 + $0x2c8] sm:$0xff]
    %v155 = vld [vmem:[%s0 + $0x2d0] sm:$0xff]
    %v156 = vld [vmem:[%s0 + $0x2d8] sm:$0xff]
    %v157 = vld [vmem:[%s0 + $0x2e0] sm:$0xff]
    %v158 = vld [vmem:[%s0 + $0x2e8] sm:$0xff]
    %v159 = vld [vmem:[%s0 + $0x2f0] sm:$0xff]
    %v160 = vld [vmem:[%s0 + $0x2f8] sm:$0xff]
    %v161 = vld [vmem:[%s0 + $0x300] sm:$0xff]
    %v162 = vld [vmem:[%s0 + $0x308] sm:$0xff]
    %v163 = vld [vmem:[%s0 + $0x310] sm:$0xff]
    %v164 = vld [vmem:[%s0 + $0x318] sm:$0xff]
    %v165 = vld [vmem:[%s0 + $0x320] sm:$0xff]
    %v166 = vld [vmem:[%s0 + $0x328] sm:$0xff]
    %v167 = vld [vmem:[%s0 + $0x330] sm:$0xff]
    %v168 = vld [vmem:[%s0 + $0x338] sm:$0xff]
    %v169 = vld [vmem:[%s0 + $0x340] sm:$0xff]
    %v170 = vld [vmem:[%s0 + $0x348] sm:$0xff]
    %v171 = vld [vmem:[%s0 + $0x350] sm:$0xff]
    %v172 = vld [vmem:[%s0 + $0x358] sm:$0xff]
    %v173 = vld [vmem:[%s0 + $0x360] sm:$0xff]
    %v174 = vld [vmem:[%s0 + $0x368] sm:$0xff]
    %v175 = vld [vmem:[%s0 + $0x370] sm:$0xff]
    %v176 = vld [vmem:[%s0 + $0x378] sm:$0xff]
    %v177 = vpack.c.bf16 %v72, %v65
    %v178 = vpack.c.bf16 %v73, %v66
    %v179 = vpack.c.bf16 %v74, %v67
    %v180 = vpack.c.bf16 %v75, %v68
    %v181 = vpack.c.bf16 %v76, %v69
    %v182 = vpack.c.bf16 %v77, %v70
    %v183 = vpack.c.bf16 %v78, %v71
    %v184 = vpack.c.bf16 %v86, %v79
    %v185 = vpack.c.bf16 %v87, %v80
    %v186 = vpack.c.bf16 %v88, %v81
    %v187 = vpack.c.bf16 %v89, %v82
    %v188 = vpack.c.bf16 %v90, %v83
    %v189 = vpack.c.bf16 %v91, %v84
    %v190 = vpack.c.bf16 %v92, %v85
    %v191 = vpack.c.bf16 %v100, %v93
    %v192 = vpack.c.bf16 %v101, %v94
    %v193 = vpack.c.bf16 %v102, %v95
    %v194 = vpack.c.bf16 %v103, %v96
    %v195 = vpack.c.bf16 %v104, %v97
    %v196 = vpack.c.bf16 %v105, %v98
    %v197 = vpack.c.bf16 %v106, %v99
    %v198 = vpack.c.bf16 %v114, %v107
    %v199 = vpack.c.bf16 %v115, %v108
    %v200 = vpack.c.bf16 %v116, %v109
    %v201 = vpack.c.bf16 %v117, %v110
    %v202 = vpack.c.bf16 %v118, %v111
    %v203 = vpack.c.bf16 %v119, %v112
    %v204 = vpack.c.bf16 %v120, %v113
    %v205 = vpack.c.bf16 %v128, %v121
    %v206 = vpack.c.bf16 %v129, %v122
    %v207 = vpack.c.bf16 %v130, %v123
    %v208 = vpack.c.bf16 %v131, %v124
    %v209 = vpack.c.bf16 %v132, %v125
    %v210 = vpack.c.bf16 %v133, %v126
    %v211 = vpack.c.bf16 %v134, %v127
    %v212 = vpack.c.bf16 %v142, %v135
    %v213 = vpack.c.bf16 %v143, %v136
    %v214 = vpack.c.bf16 %v144, %v137
    %v215 = vpack.c.bf16 %v145, %v138
    %v216 = vpack.c.bf16 %v146, %v139
    %v217 = vpack.c.bf16 %v147, %v140
    %v218 = vpack.c.bf16 %v148, %v141
    %v219 = vpack.c.bf16 %v156, %v149
    %v220 = vpack.c.bf16 %v157, %v150
    %v221 = vpack.c.bf16 %v158, %v151
    %v222 = vpack.c.bf16 %v159, %v152
    %v223 = vpack.c.bf16 %v160, %v153
    %v224 = vpack.c.bf16 %v161, %v154
    %v225 = vpack.c.bf16 %v162, %v155
    %v226 = vpack.c.bf16 %v170, %v163
    %v227 = vpack.c.bf16 %v171, %v164
    %v228 = vpack.c.bf16 %v172, %v165
    %v229 = vpack.c.bf16 %v173, %v166
    %v230 = vpack.c.bf16 %v174, %v167
    %v231 = vpack.c.bf16 %v175, %v168
    %v232 = vpack.c.bf16 %v176, %v169
    %v233 = vld [vmem:[%s1] sm:$0xff]
    %v234 = vld [vmem:[%s1 + $0x8] sm:$0xff]
    %v235 = vld [vmem:[%s1 + $0x10] sm:$0xff]
    %v236 = vld [vmem:[%s1 + $0x18] sm:$0xff]
    %v237 = vld [vmem:[%s1 + $0x20] sm:$0xff]
    %v238 = vld [vmem:[%s1 + $0x28] sm:$0xff]
    %v239 = vld [vmem:[%s1 + $0x30] sm:$0xff]
    %v240 = vld [vmem:[%s1 + $0x38] sm:$0xff]
    %v241 = vld [vmem:[%s1 + $0x40] sm:$0xff]
    %v242 = vld [vmem:[%s1 + $0x48] sm:$0xff]
    %v243 = vld [vmem:[%s1 + $0x50] sm:$0xff]
    %v244 = vld [vmem:[%s1 + $0x58] sm:$0xff]
    %v245 = vld [vmem:[%s1 + $0x60] sm:$0xff]
    %v246 = vld [vmem:[%s1 + $0x68] sm:$0xff]
    %v247 = vld [vmem:[%s1 + $0x70] sm:$0xff]
    %v248 = vld [vmem:[%s1 + $0x78] sm:$0xff]
    %v249 = vld [vmem:[%s1 + $0x80] sm:$0xff]
    %v250 = vld [vmem:[%s1 + $0x88] sm:$0xff]
    %v251 = vld [vmem:[%s1 + $0x90] sm:$0xff]
    %v252 = vld [vmem:[%s1 + $0x98] sm:$0xff]
    %v253 = vld [vmem:[%s1 + $0xa0] sm:$0xff]
    %v254 = vld [vmem:[%s1 + $0xa8] sm:$0xff]
    %v255 = vld [vmem:[%s1 + $0xb0] sm:$0xff]
    %v256 = vld [vmem:[%s1 + $0xb8] sm:$0xff]
    %v257 = vld [vmem:[%s1 + $0xc0] sm:$0xff]
    %v258 = vld [vmem:[%s1 + $0xc8] sm:$0xff]
    %v259 = vld [vmem:[%s1 + $0xd0] sm:$0xff]
    %v260 = vld [vmem:[%s1 + $0xd8] sm:$0xff]
    %v261 = vld [vmem:[%s1 + $0xe0] sm:$0xff]
    %v262 = vld [vmem:[%s1 + $0xe8] sm:$0xff]
    %v263 = vld [vmem:[%s1 + $0xf0] sm:$0xff]
    %v264 = vld [vmem:[%s1 + $0xf8] sm:$0xff]
    %v265 = vld [vmem:[%s1 + $0x100] sm:$0xff]
    %v266 = vld [vmem:[%s1 + $0x108] sm:$0xff]
    %v267 = vld [vmem:[%s1 + $0x110] sm:$0xff]
    %v268 = vld [vmem:[%s1 + $0x118] sm:$0xff]
    %v269 = vld [vmem:[%s1 + $0x120] sm:$0xff]
    %v270 = vld [vmem:[%s1 + $0x128] sm:$0xff]
    %v271 = vld [vmem:[%s1 + $0x130] sm:$0xff]
    %v272 = vld [vmem:[%s1 + $0x138] sm:$0xff]
    %v273 = vld [vmem:[%s1 + $0x140] sm:$0xff]
    %v274 = vld [vmem:[%s1 + $0x148] sm:$0xff]
    %v275 = vld [vmem:[%s1 + $0x150] sm:$0xff]
    %v276 = vld [vmem:[%s1 + $0x158] sm:$0xff]
    %v277 = vld [vmem:[%s1 + $0x160] sm:$0xff]
    %v278 = vld [vmem:[%s1 + $0x168] sm:$0xff]
    %v279 = vld [vmem:[%s1 + $0x170] sm:$0xff]
    %v280 = vld [vmem:[%s1 + $0x178] sm:$0xff]
    %v281 = vld [vmem:[%s1 + $0x180] sm:$0xff]
    %v282 = vld [vmem:[%s1 + $0x188] sm:$0xff]
    %v283 = vld [vmem:[%s1 + $0x190] sm:$0xff]
    %v284 = vld [vmem:[%s1 + $0x198] sm:$0xff]
    %v285 = vld [vmem:[%s1 + $0x1a0] sm:$0xff]
    %v286 = vld [vmem:[%s1 + $0x1a8] sm:$0xff]
    %v287 = vld [vmem:[%s1 + $0x1b0] sm:$0xff]
    %v288 = vld [vmem:[%s1 + $0x1b8] sm:$0xff]
    %v289 = vld [vmem:[%s1 + $0x1c0] sm:$0xff]
    %v290 = vld [vmem:[%s1 + $0x1c8] sm:$0xff]
    %v291 = vld [vmem:[%s1 + $0x1d0] sm:$0xff]
    %v292 = vld [vmem:[%s1 + $0x1d8] sm:$0xff]
    %v293 = vld [vmem:[%s1 + $0x1e0] sm:$0xff]
    %v294 = vld [vmem:[%s1 + $0x1e8] sm:$0xff]
    %v295 = vld [vmem:[%s1 + $0x1f0] sm:$0xff]
    %v296 = vld [vmem:[%s1 + $0x1f8] sm:$0xff]
    %v297 = vld [vmem:[%s1 + $0x200] sm:$0xff]
    %v298 = vld [vmem:[%s1 + $0x208] sm:$0xff]
    %v299 = vld [vmem:[%s1 + $0x210] sm:$0xff]
    %v300 = vld [vmem:[%s1 + $0x218] sm:$0xff]
    %v301 = vld [vmem:[%s1 + $0x220] sm:$0xff]
    %v302 = vld [vmem:[%s1 + $0x228] sm:$0xff]
    %v303 = vld [vmem:[%s1 + $0x230] sm:$0xff]
    %v304 = vld [vmem:[%s1 + $0x238] sm:$0xff]
    %v305 = vld [vmem:[%s1 + $0x240] sm:$0xff]
    %v306 = vld [vmem:[%s1 + $0x248] sm:$0xff]
    %v307 = vld [vmem:[%s1 + $0x250] sm:$0xff]
    %v308 = vld [vmem:[%s1 + $0x258] sm:$0xff]
    %v309 = vld [vmem:[%s1 + $0x260] sm:$0xff]
    %v310 = vld [vmem:[%s1 + $0x268] sm:$0xff]
    %v311 = vld [vmem:[%s1 + $0x270] sm:$0xff]
    %v312 = vld [vmem:[%s1 + $0x278] sm:$0xff]
    %v313 = vld [vmem:[%s1 + $0x280] sm:$0xff]
    %v314 = vld [vmem:[%s1 + $0x288] sm:$0xff]
    %v315 = vld [vmem:[%s1 + $0x290] sm:$0xff]
    %v316 = vld [vmem:[%s1 + $0x298] sm:$0xff]
    %v317 = vld [vmem:[%s1 + $0x2a0] sm:$0xff]
    %v318 = vld [vmem:[%s1 + $0x2a8] sm:$0xff]
    %v319 = vld [vmem:[%s1 + $0x2b0] sm:$0xff]
    %v320 = vld [vmem:[%s1 + $0x2b8] sm:$0xff]
    %v321 = vld [vmem:[%s1 + $0x2c0] sm:$0xff]
    %v322 = vld [vmem:[%s1 + $0x2c8] sm:$0xff]
    %v323 = vld [vmem:[%s1 + $0x2d0] sm:$0xff]
    %v324 = vld [vmem:[%s1 + $0x2d8] sm:$0xff]
    %v325 = vld [vmem:[%s1 + $0x2e0] sm:$0xff]
    %v326 = vld [vmem:[%s1 + $0x2e8] sm:$0xff]
    %v327 = vld [vmem:[%s1 + $0x2f0] sm:$0xff]
    %v328 = vld [vmem:[%s1 + $0x2f8] sm:$0xff]
    %v329 = vld [vmem:[%s1 + $0x300] sm:$0xff]
    %v330 = vld [vmem:[%s1 + $0x308] sm:$0xff]
    %v331 = vld [vmem:[%s1 + $0x310] sm:$0xff]
    %v332 = vld [vmem:[%s1 + $0x318] sm:$0xff]
    %v333 = vld [vmem:[%s1 + $0x320] sm:$0xff]
    %v334 = vld [vmem:[%s1 + $0x328] sm:$0xff]
    %v335 = vld [vmem:[%s1 + $0x330] sm:$0xff]
    %v336 = vld [vmem:[%s1 + $0x338] sm:$0xff]
    %v337 = vld [vmem:[%s1 + $0x340] sm:$0xff]
    %v338 = vld [vmem:[%s1 + $0x348] sm:$0xff]
    %v339 = vld [vmem:[%s1 + $0x350] sm:$0xff]
    %v340 = vld [vmem:[%s1 + $0x358] sm:$0xff]
    %v341 = vld [vmem:[%s1 + $0x360] sm:$0xff]
    %v342 = vld [vmem:[%s1 + $0x368] sm:$0xff]
    %v343 = vld [vmem:[%s1 + $0x370] sm:$0xff]
    %v344 = vld [vmem:[%s1 + $0x378] sm:$0xff]
    %v345 = vld [vmem:[%s1 + $0x380] sm:$0xff]
    %v346 = vld [vmem:[%s1 + $0x388] sm:$0xff]
    %v347 = vld [vmem:[%s1 + $0x390] sm:$0xff]
    %v348 = vld [vmem:[%s1 + $0x398] sm:$0xff]
    %v349 = vld [vmem:[%s1 + $0x3a0] sm:$0xff]
    %v350 = vld [vmem:[%s1 + $0x3a8] sm:$0xff]
    %v351 = vld [vmem:[%s1 + $0x3b0] sm:$0xff]
    %v352 = vld [vmem:[%s1 + $0x3b8] sm:$0xff]
    %v353 = vld [vmem:[%s1 + $0x3c0] sm:$0xff]
    %v354 = vld [vmem:[%s1 + $0x3c8] sm:$0xff]
    %v355 = vld [vmem:[%s1 + $0x3d0] sm:$0xff]
    %v356 = vld [vmem:[%s1 + $0x3d8] sm:$0xff]
    %v357 = vld [vmem:[%s1 + $0x3e0] sm:$0xff]
    %v358 = vld [vmem:[%s1 + $0x3e8] sm:$0xff]
    %v359 = vld [vmem:[%s1 + $0x3f0] sm:$0xff]
    %v360 = vld [vmem:[%s1 + $0x3f8] sm:$0xff]
    %v361 = vld [vmem:[%s1 + $0x400] sm:$0xff]
    %v362 = vld [vmem:[%s1 + $0x408] sm:$0xff]
    %v363 = vld [vmem:[%s1 + $0x410] sm:$0xff]
    %v364 = vld [vmem:[%s1 + $0x418] sm:$0xff]
    %v365 = vld [vmem:[%s1 + $0x420] sm:$0xff]
    %v366 = vld [vmem:[%s1 + $0x428] sm:$0xff]
    %v367 = vld [vmem:[%s1 + $0x430] sm:$0xff]
    %v368 = vld [vmem:[%s1 + $0x438] sm:$0xff]
    %v369 = vld [vmem:[%s1 + $0x440] sm:$0xff]
    %v370 = vld [vmem:[%s1 + $0x448] sm:$0xff]
    %v371 = vld [vmem:[%s1 + $0x450] sm:$0xff]
    %v372 = vld [vmem:[%s1 + $0x458] sm:$0xff]
    %v373 = vld [vmem:[%s1 + $0x460] sm:$0xff]
    %v374 = vld [vmem:[%s1 + $0x468] sm:$0xff]
    %v375 = vld [vmem:[%s1 + $0x470] sm:$0xff]
    %v376 = vld [vmem:[%s1 + $0x478] sm:$0xff]
    %v377 = vld [vmem:[%s1 + $0x480] sm:$0xff]
    %v378 = vld [vmem:[%s1 + $0x488] sm:$0xff]
    %v379 = vld [vmem:[%s1 + $0x490] sm:$0xff]
    %v380 = vld [vmem:[%s1 + $0x498] sm:$0xff]
    %v381 = vld [vmem:[%s1 + $0x4a0] sm:$0xff]
    %v382 = vld [vmem:[%s1 + $0x4a8] sm:$0xff]
    %v383 = vld [vmem:[%s1 + $0x4b0] sm:$0xff]
    %v384 = vld [vmem:[%s1 + $0x4b8] sm:$0xff]
    %v385 = vld [vmem:[%s1 + $0x4c0] sm:$0xff]
    %v386 = vld [vmem:[%s1 + $0x4c8] sm:$0xff]
    %v387 = vld [vmem:[%s1 + $0x4d0] sm:$0xff]
    %v388 = vld [vmem:[%s1 + $0x4d8] sm:$0xff]
    %v389 = vld [vmem:[%s1 + $0x4e0] sm:$0xff]
    %v390 = vld [vmem:[%s1 + $0x4e8] sm:$0xff]
    %v391 = vld [vmem:[%s1 + $0x4f0] sm:$0xff]
    %v392 = vld [vmem:[%s1 + $0x4f8] sm:$0xff]
    %v393 = vld [vmem:[%s1 + $0x500] sm:$0xff]
    %v394 = vld [vmem:[%s1 + $0x508] sm:$0xff]
    %v395 = vld [vmem:[%s1 + $0x510] sm:$0xff]
    %v396 = vld [vmem:[%s1 + $0x518] sm:$0xff]
    %v397 = vld [vmem:[%s1 + $0x520] sm:$0xff]
    %v398 = vld [vmem:[%s1 + $0x528] sm:$0xff]
    %v399 = vld [vmem:[%s1 + $0x530] sm:$0xff]
    %v400 = vld [vmem:[%s1 + $0x538] sm:$0xff]
    %v401 = vld [vmem:[%s1 + $0x540] sm:$0xff]
    %v402 = vld [vmem:[%s1 + $0x548] sm:$0xff]
    %v403 = vld [vmem:[%s1 + $0x550] sm:$0xff]
    %v404 = vld [vmem:[%s1 + $0x558] sm:$0xff]
    %v405 = vld [vmem:[%s1 + $0x560] sm:$0xff]
    %v406 = vld [vmem:[%s1 + $0x568] sm:$0xff]
    %v407 = vld [vmem:[%s1 + $0x570] sm:$0xff]
    %v408 = vld [vmem:[%s1 + $0x578] sm:$0xff]
    %v409 = vld [vmem:[%s1 + $0x580] sm:$0xff]
    %v410 = vld [vmem:[%s1 + $0x588] sm:$0xff]
    %v411 = vld [vmem:[%s1 + $0x590] sm:$0xff]
    %v412 = vld [vmem:[%s1 + $0x598] sm:$0xff]
    %v413 = vld [vmem:[%s1 + $0x5a0] sm:$0xff]
    %v414 = vld [vmem:[%s1 + $0x5a8] sm:$0xff]
    %v415 = vld [vmem:[%s1 + $0x5b0] sm:$0xff]
    %v416 = vld [vmem:[%s1 + $0x5b8] sm:$0xff]
    %v417 = vld [vmem:[%s1 + $0x5c0] sm:$0xff]
    %v418 = vld [vmem:[%s1 + $0x5c8] sm:$0xff]
    %v419 = vld [vmem:[%s1 + $0x5d0] sm:$0xff]
    %v420 = vld [vmem:[%s1 + $0x5d8] sm:$0xff]
    %v421 = vld [vmem:[%s1 + $0x5e0] sm:$0xff]
    %v422 = vld [vmem:[%s1 + $0x5e8] sm:$0xff]
    %v423 = vld [vmem:[%s1 + $0x5f0] sm:$0xff]
    %v424 = vld [vmem:[%s1 + $0x5f8] sm:$0xff]
    %v425 = vld [vmem:[%s1 + $0x600] sm:$0xff]
    %v426 = vld [vmem:[%s1 + $0x608] sm:$0xff]
    %v427 = vld [vmem:[%s1 + $0x610] sm:$0xff]
    %v428 = vld [vmem:[%s1 + $0x618] sm:$0xff]
    %v429 = vld [vmem:[#allocation2] sm:$0xf]
    %v431 = vlaneseq
    %v432 = vshrl.u32 %v431, 7
    %v433 = vsub.s32 0, %v432
    %v434 = vrot.slane %v429, %v433
    %v435 = vlaneseq
    %v436 = vshrl.u32 %v435, 7
    %v437 = vsub.s32 1, %v436
    %v438 = vrot.slane %v429, %v437
    %v439 = vlaneseq
    %v440 = vshrl.u32 %v439, 7
    %v441 = vsub.s32 2, %v440
    %v442 = vrot.slane %v429, %v441
    %v443 = vlaneseq
    %v444 = vshrl.u32 %v443, 7
    %v445 = vsub.s32 3, %v444
    %v446 = vrot.slane %v429, %v445
    %v647 = vunpack.c.l.b16 %v233
    %v648 = vunpack.c.h.b16 %v233
    %v649 = vunpack.c.l.b16 %v234
    %v650 = vunpack.c.h.b16 %v234
    %v651 = vunpack.c.l.b16 %v235
    %v652 = vunpack.c.h.b16 %v235
    %v653 = vunpack.c.l.b16 %v236
    %v654 = vunpack.c.h.b16 %v236
    %v655 = vunpack.c.l.b16 %v237
    %v656 = vunpack.c.h.b16 %v237
    %v657 = vunpack.c.l.b16 %v238
    %v658 = vunpack.c.h.b16 %v238
    %v659 = vunpack.c.l.b16 %v239
    %v660 = vunpack.c.h.b16 %v239
    %v661 = vunpack.c.l.b16 %v240
    %v662 = vunpack.c.h.b16 %v240
    %v663 = vunpack.c.l.b16 %v241
    %v664 = vunpack.c.h.b16 %v241
    %v665 = vunpack.c.l.b16 %v242
    %v666 = vunpack.c.h.b16 %v242
    %v667 = vunpack.c.l.b16 %v243
    %v668 = vunpack.c.h.b16 %v243
    %v669 = vunpack.c.l.b16 %v244
    %v670 = vunpack.c.h.b16 %v244
    %v671 = vunpack.c.l.b16 %v245
    %v672 = vunpack.c.h.b16 %v245
    %v673 = vunpack.c.l.b16 %v246
    %v674 = vunpack.c.h.b16 %v246
    %v675 = vunpack.c.l.b16 %v247
    %v676 = vunpack.c.h.b16 %v247
    %v677 = vunpack.c.l.b16 %v248
    %v678 = vunpack.c.h.b16 %v248
    %v679 = vunpack.c.l.b16 %v249
    %v680 = vunpack.c.h.b16 %v249
    %v681 = vunpack.c.l.b16 %v250
    %v682 = vunpack.c.h.b16 %v250
    %v683 = vunpack.c.l.b16 %v251
    %v684 = vunpack.c.h.b16 %v251
    %v685 = vunpack.c.l.b16 %v252
    %v686 = vunpack.c.h.b16 %v252
    %v687 = vunpack.c.l.b16 %v253
    %v688 = vunpack.c.h.b16 %v253
    %v689 = vunpack.c.l.b16 %v254
    %v690 = vunpack.c.h.b16 %v254
    %v691 = vunpack.c.l.b16 %v255
    %v692 = vunpack.c.h.b16 %v255
    %v693 = vunpack.c.l.b16 %v256
    %v694 = vunpack.c.h.b16 %v256
    %v695 = vunpack.c.l.b16 %v257
    %v696 = vunpack.c.h.b16 %v257
    %v697 = vunpack.c.l.b16 %v258
    %v698 = vunpack.c.h.b16 %v258
    %v699 = vunpack.c.l.b16 %v259
    %v700 = vunpack.c.h.b16 %v259
    %v701 = vunpack.c.l.b16 %v260
    %v702 = vunpack.c.h.b16 %v260
    %v703 = vunpack.c.l.b16 %v261
    %v704 = vunpack.c.h.b16 %v261
    %v705 = vunpack.c.l.b16 %v262
    %v706 = vunpack.c.h.b16 %v262
    %v707 = vunpack.c.l.b16 %v263
    %v708 = vunpack.c.h.b16 %v263
    %v709 = vunpack.c.l.b16 %v264
    %v710 = vunpack.c.h.b16 %v264
    %v711 = vunpack.c.l.b16 %v265
    %v712 = vunpack.c.h.b16 %v265
    %v713 = vunpack.c.l.b16 %v266
    %v714 = vunpack.c.h.b16 %v266
    %v715 = vunpack.c.l.b16 %v267
    %v716 = vunpack.c.h.b16 %v267
    %v717 = vunpack.c.l.b16 %v268
    %v718 = vunpack.c.h.b16 %v268
    %v719 = vunpack.c.l.b16 %v269
    %v720 = vunpack.c.h.b16 %v269
    %v721 = vunpack.c.l.b16 %v270
    %v722 = vunpack.c.h.b16 %v270
    %v723 = vunpack.c.l.b16 %v271
    %v724 = vunpack.c.h.b16 %v271
    %v725 = vunpack.c.l.b16 %v272
    %v726 = vunpack.c.h.b16 %v272
    %v727 = vunpack.c.l.b16 %v273
    %v728 = vunpack.c.h.b16 %v273
    %v729 = vunpack.c.l.b16 %v274
    %v730 = vunpack.c.h.b16 %v274
    %v731 = vunpack.c.l.b16 %v275
    %v732 = vunpack.c.h.b16 %v275
    %v733 = vunpack.c.l.b16 %v276
    %v734 = vunpack.c.h.b16 %v276
    %v735 = vunpack.c.l.b16 %v277
    %v736 = vunpack.c.h.b16 %v277
    %v737 = vunpack.c.l.b16 %v278
    %v738 = vunpack.c.h.b16 %v278
    %v739 = vunpack.c.l.b16 %v279
    %v740 = vunpack.c.h.b16 %v279
    %v741 = vunpack.c.l.b16 %v280
    %v742 = vunpack.c.h.b16 %v280
    %v743 = vunpack.c.l.b16 %v281
    %v744 = vunpack.c.h.b16 %v281
    %v745 = vunpack.c.l.b16 %v282
    %v746 = vunpack.c.h.b16 %v282
    %v747 = vunpack.c.l.b16 %v283
    %v748 = vunpack.c.h.b16 %v283
    %v749 = vunpack.c.l.b16 %v284
    %v750 = vunpack.c.h.b16 %v284
    %v751 = vunpack.c.l.b16 %v285
    %v752 = vunpack.c.h.b16 %v285
    %v753 = vunpack.c.l.b16 %v286
    %v754 = vunpack.c.h.b16 %v286
    %v755 = vunpack.c.l.b16 %v287
    %v756 = vunpack.c.h.b16 %v287
    %v757 = vunpack.c.l.b16 %v288
    %v758 = vunpack.c.h.b16 %v288
    %v759 = vunpack.c.l.b16 %v289
    %v760 = vunpack.c.h.b16 %v289
    %v761 = vunpack.c.l.b16 %v290
    %v762 = vunpack.c.h.b16 %v290
    %v763 = vunpack.c.l.b16 %v291
    %v764 = vunpack.c.h.b16 %v291
    %v765 = vunpack.c.l.b16 %v292
    %v766 = vunpack.c.h.b16 %v292
    %v767 = vunpack.c.l.b16 %v293
    %v768 = vunpack.c.h.b16 %v293
    %v769 = vunpack.c.l.b16 %v294
    %v770 = vunpack.c.h.b16 %v294
    %v771 = vunpack.c.l.b16 %v295
    %v772 = vunpack.c.h.b16 %v295
    %v773 = vunpack.c.l.b16 %v296
    %v774 = vunpack.c.h.b16 %v296
    %v775 = vunpack.c.l.b16 %v297
    %v776 = vunpack.c.h.b16 %v297
    %v777 = vunpack.c.l.b16 %v298
    %v778 = vunpack.c.h.b16 %v298
    %v779 = vunpack.c.l.b16 %v299
    %v780 = vunpack.c.h.b16 %v299
    %v781 = vunpack.c.l.b16 %v300
    %v782 = vunpack.c.h.b16 %v300
    %v783 = vunpack.c.l.b16 %v301
    %v784 = vunpack.c.h.b16 %v301
    %v785 = vunpack.c.l.b16 %v302
    %v786 = vunpack.c.h.b16 %v302
    %v787 = vunpack.c.l.b16 %v303
    %v788 = vunpack.c.h.b16 %v303
    %v789 = vunpack.c.l.b16 %v304
    %v790 = vunpack.c.h.b16 %v304
    %v791 = vunpack.c.l.b16 %v305
    %v792 = vunpack.c.h.b16 %v305
    %v793 = vunpack.c.l.b16 %v306
    %v794 = vunpack.c.h.b16 %v306
    %v795 = vunpack.c.l.b16 %v307
    %v796 = vunpack.c.h.b16 %v307
    %v797 = vunpack.c.l.b16 %v308
    %v798 = vunpack.c.h.b16 %v308
    %v799 = vunpack.c.l.b16 %v309
    %v800 = vunpack.c.h.b16 %v309
    %v801 = vunpack.c.l.b16 %v310
    %v802 = vunpack.c.h.b16 %v310
    %v803 = vunpack.c.l.b16 %v311
    %v804 = vunpack.c.h.b16 %v311
    %v805 = vunpack.c.l.b16 %v312
    %v806 = vunpack.c.h.b16 %v312
    %v807 = vunpack.c.l.b16 %v313
    %v808 = vunpack.c.h.b16 %v313
    %v809 = vunpack.c.l.b16 %v314
    %v810 = vunpack.c.h.b16 %v314
    %v811 = vunpack.c.l.b16 %v315
    %v812 = vunpack.c.h.b16 %v315
    %v813 = vunpack.c.l.b16 %v316
    %v814 = vunpack.c.h.b16 %v316
    %v815 = vunpack.c.l.b16 %v317
    %v816 = vunpack.c.h.b16 %v317
    %v817 = vunpack.c.l.b16 %v318
    %v818 = vunpack.c.h.b16 %v318
    %v819 = vunpack.c.l.b16 %v319
    %v820 = vunpack.c.h.b16 %v319
    %v821 = vunpack.c.l.b16 %v320
    %v822 = vunpack.c.h.b16 %v320
    %v823 = vunpack.c.l.b16 %v321
    %v824 = vunpack.c.h.b16 %v321
    %v825 = vunpack.c.l.b16 %v322
    %v826 = vunpack.c.h.b16 %v322
    %v827 = vunpack.c.l.b16 %v323
    %v828 = vunpack.c.h.b16 %v323
    %v829 = vunpack.c.l.b16 %v324
    %v830 = vunpack.c.h.b16 %v324
    %v831 = vunpack.c.l.b16 %v325
    %v832 = vunpack.c.h.b16 %v325
    %v833 = vunpack.c.l.b16 %v326
    %v834 = vunpack.c.h.b16 %v326
    %v835 = vunpack.c.l.b16 %v327
    %v836 = vunpack.c.h.b16 %v327
    %v837 = vunpack.c.l.b16 %v328
    %v838 = vunpack.c.h.b16 %v328
    %v839 = vunpack.c.l.b16 %v329
    %v840 = vunpack.c.h.b16 %v329
    %v841 = vunpack.c.l.b16 %v330
    %v842 = vunpack.c.h.b16 %v330
    %v843 = vunpack.c.l.b16 %v331
    %v844 = vunpack.c.h.b16 %v331
    %v845 = vunpack.c.l.b16 %v332
    %v846 = vunpack.c.h.b16 %v332
    %v847 = vunpack.c.l.b16 %v333
    %v848 = vunpack.c.h.b16 %v333
    %v849 = vunpack.c.l.b16 %v334
    %v850 = vunpack.c.h.b16 %v334
    %v851 = vunpack.c.l.b16 %v335
    %v852 = vunpack.c.h.b16 %v335
    %v853 = vunpack.c.l.b16 %v336
    %v854 = vunpack.c.h.b16 %v336
    %v855 = vunpack.c.l.b16 %v337
    %v856 = vunpack.c.h.b16 %v337
    %v857 = vunpack.c.l.b16 %v338
    %v858 = vunpack.c.h.b16 %v338
    %v859 = vunpack.c.l.b16 %v339
    %v860 = vunpack.c.h.b16 %v339
    %v861 = vunpack.c.l.b16 %v340
    %v862 = vunpack.c.h.b16 %v340
    %v863 = vunpack.c.l.b16 %v341
    %v864 = vunpack.c.h.b16 %v341
    %v865 = vunpack.c.l.b16 %v342
    %v866 = vunpack.c.h.b16 %v342
    %v867 = vunpack.c.l.b16 %v343
    %v868 = vunpack.c.h.b16 %v343
    %v869 = vunpack.c.l.b16 %v344
    %v870 = vunpack.c.h.b16 %v344
    %v871 = vunpack.c.l.b16 %v345
    %v872 = vunpack.c.h.b16 %v345
    %v873 = vunpack.c.l.b16 %v346
    %v874 = vunpack.c.h.b16 %v346
    %v875 = vunpack.c.l.b16 %v347
    %v876 = vunpack.c.h.b16 %v347
    %v877 = vunpack.c.l.b16 %v348
    %v878 = vunpack.c.h.b16 %v348
    %v879 = vunpack.c.l.b16 %v349
    %v880 = vunpack.c.h.b16 %v349
    %v881 = vunpack.c.l.b16 %v350
    %v882 = vunpack.c.h.b16 %v350
    %v883 = vunpack.c.l.b16 %v351
    %v884 = vunpack.c.h.b16 %v351
    %v885 = vunpack.c.l.b16 %v352
    %v886 = vunpack.c.h.b16 %v352
    %v887 = vunpack.c.l.b16 %v353
    %v888 = vunpack.c.h.b16 %v353
    %v889 = vunpack.c.l.b16 %v354
    %v890 = vunpack.c.h.b16 %v354
    %v891 = vunpack.c.l.b16 %v355
    %v892 = vunpack.c.h.b16 %v355
    %v893 = vunpack.c.l.b16 %v356
    %v894 = vunpack.c.h.b16 %v356
    %v895 = vunpack.c.l.b16 %v357
    %v896 = vunpack.c.h.b16 %v357
    %v897 = vunpack.c.l.b16 %v358
    %v898 = vunpack.c.h.b16 %v358
    %v899 = vunpack.c.l.b16 %v359
    %v900 = vunpack.c.h.b16 %v359
    %v901 = vunpack.c.l.b16 %v360
    %v902 = vunpack.c.h.b16 %v360
    %v903 = vunpack.c.l.b16 %v361
    %v904 = vunpack.c.h.b16 %v361
    %v905 = vunpack.c.l.b16 %v362
    %v906 = vunpack.c.h.b16 %v362
    %v907 = vunpack.c.l.b16 %v363
    %v908 = vunpack.c.h.b16 %v363
    %v909 = vunpack.c.l.b16 %v364
    %v910 = vunpack.c.h.b16 %v364
    %v911 = vunpack.c.l.b16 %v365
    %v912 = vunpack.c.h.b16 %v365
    %v913 = vunpack.c.l.b16 %v366
    %v914 = vunpack.c.h.b16 %v366
    %v915 = vunpack.c.l.b16 %v367
    %v916 = vunpack.c.h.b16 %v367
    %v917 = vunpack.c.l.b16 %v368
    %v918 = vunpack.c.h.b16 %v368
    %v919 = vunpack.c.l.b16 %v369
    %v920 = vunpack.c.h.b16 %v369
    %v921 = vunpack.c.l.b16 %v370
    %v922 = vunpack.c.h.b16 %v370
    %v923 = vunpack.c.l.b16 %v371
    %v924 = vunpack.c.h.b16 %v371
    %v925 = vunpack.c.l.b16 %v372
    %v926 = vunpack.c.h.b16 %v372
    %v927 = vunpack.c.l.b16 %v373
    %v928 = vunpack.c.h.b16 %v373
    %v929 = vunpack.c.l.b16 %v374
    %v930 = vunpack.c.h.b16 %v374
    %v931 = vunpack.c.l.b16 %v375
    %v932 = vunpack.c.h.b16 %v375
    %v933 = vunpack.c.l.b16 %v376
    %v934 = vunpack.c.h.b16 %v376
    %v935 = vunpack.c.l.b16 %v377
    %v936 = vunpack.c.h.b16 %v377
    %v937 = vunpack.c.l.b16 %v378
    %v938 = vunpack.c.h.b16 %v378
    %v939 = vunpack.c.l.b16 %v379
    %v940 = vunpack.c.h.b16 %v379
    %v941 = vunpack.c.l.b16 %v380
    %v942 = vunpack.c.h.b16 %v380
    %v943 = vunpack.c.l.b16 %v381
    %v944 = vunpack.c.h.b16 %v381
    %v945 = vunpack.c.l.b16 %v382
    %v946 = vunpack.c.h.b16 %v382
    %v947 = vunpack.c.l.b16 %v383
    %v948 = vunpack.c.h.b16 %v383
    %v949 = vunpack.c.l.b16 %v384
    %v950 = vunpack.c.h.b16 %v384
    %v951 = vunpack.c.l.b16 %v385
    %v952 = vunpack.c.h.b16 %v385
    %v953 = vunpack.c.l.b16 %v386
    %v954 = vunpack.c.h.b16 %v386
    %v955 = vunpack.c.l.b16 %v387
    %v956 = vunpack.c.h.b16 %v387
    %v957 = vunpack.c.l.b16 %v388
    %v958 = vunpack.c.h.b16 %v388
    %v959 = vunpack.c.l.b16 %v389
    %v960 = vunpack.c.h.b16 %v389
    %v961 = vunpack.c.l.b16 %v390
    %v962 = vunpack.c.h.b16 %v390
    %v963 = vunpack.c.l.b16 %v391
    %v964 = vunpack.c.h.b16 %v391
    %v965 = vunpack.c.l.b16 %v392
    %v966 = vunpack.c.h.b16 %v392
    %v967 = vunpack.c.l.b16 %v393
    %v968 = vunpack.c.h.b16 %v393
    %v969 = vunpack.c.l.b16 %v394
    %v970 = vunpack.c.h.b16 %v394
    %v971 = vunpack.c.l.b16 %v395
    %v972 = vunpack.c.h.b16 %v395
    %v973 = vunpack.c.l.b16 %v396
    %v974 = vunpack.c.h.b16 %v396
    %v975 = vunpack.c.l.b16 %v397
    %v976 = vunpack.c.h.b16 %v397
    %v977 = vunpack.c.l.b16 %v398
    %v978 = vunpack.c.h.b16 %v398
    %v979 = vunpack.c.l.b16 %v399
    %v980 = vunpack.c.h.b16 %v399
    %v981 = vunpack.c.l.b16 %v400
    %v982 = vunpack.c.h.b16 %v400
    %v983 = vunpack.c.l.b16 %v401
    %v984 = vunpack.c.h.b16 %v401
    %v985 = vunpack.c.l.b16 %v402
    %v986 = vunpack.c.h.b16 %v402
    %v987 = vunpack.c.l.b16 %v403
    %v988 = vunpack.c.h.b16 %v403
    %v989 = vunpack.c.l.b16 %v404
    %v990 = vunpack.c.h.b16 %v404
    %v991 = vunpack.c.l.b16 %v405
    %v992 = vunpack.c.h.b16 %v405
    %v993 = vunpack.c.l.b16 %v406
    %v994 = vunpack.c.h.b16 %v406
    %v995 = vunpack.c.l.b16 %v407
    %v996 = vunpack.c.h.b16 %v407
    %v997 = vunpack.c.l.b16 %v408
    %v998 = vunpack.c.h.b16 %v408
    %v999 = vunpack.c.l.b16 %v409
    %v1000 = vunpack.c.h.b16 %v409
    %v1001 = vunpack.c.l.b16 %v410
    %v1002 = vunpack.c.h.b16 %v410
    %v1003 = vunpack.c.l.b16 %v411
    %v1004 = vunpack.c.h.b16 %v411
    %v1005 = vunpack.c.l.b16 %v412
    %v1006 = vunpack.c.h.b16 %v412
    %v1007 = vunpack.c.l.b16 %v413
    %v1008 = vunpack.c.h.b16 %v413
    %v1009 = vunpack.c.l.b16 %v414
    %v1010 = vunpack.c.h.b16 %v414
    %v1011 = vunpack.c.l.b16 %v415
    %v1012 = vunpack.c.h.b16 %v415
    %v1013 = vunpack.c.l.b16 %v416
    %v1014 = vunpack.c.h.b16 %v416
    %v1015 = vunpack.c.l.b16 %v417
    %v1016 = vunpack.c.h.b16 %v417
    %v1017 = vunpack.c.l.b16 %v418
    %v1018 = vunpack.c.h.b16 %v418
    %v1019 = vunpack.c.l.b16 %v419
    %v1020 = vunpack.c.h.b16 %v419
    %v1021 = vunpack.c.l.b16 %v420
    %v1022 = vunpack.c.h.b16 %v420
    %v1023 = vunpack.c.l.b16 %v421
    %v1024 = vunpack.c.h.b16 %v421
    %v1025 = vunpack.c.l.b16 %v422
    %v1026 = vunpack.c.h.b16 %v422
    %v1027 = vunpack.c.l.b16 %v423
    %v1028 = vunpack.c.h.b16 %v423
    %v1029 = vunpack.c.l.b16 %v424
    %v1030 = vunpack.c.h.b16 %v424
    %v1031 = vunpack.c.l.b16 %v425
    %v1032 = vunpack.c.h.b16 %v425
    %v1033 = vunpack.c.l.b16 %v426
    %v1034 = vunpack.c.h.b16 %v426
    %v1035 = vunpack.c.l.b16 %v427
    %v1036 = vunpack.c.h.b16 %v427
    %v1037 = vunpack.c.l.b16 %v428
    %v1038 = vunpack.c.h.b16 %v428
    %v1039 = vpack.c.b16 %v651, %v647
    %v1040 = vpack.c.b16 %v652, %v648
    %v1041 = vpack.c.b16 %v653, %v649
    %v1042 = vpack.c.b16 %v654, %v650
    %v1043 = vpack.c.b16 %v659, %v655
    %v1044 = vpack.c.b16 %v660, %v656
    %v1045 = vpack.c.b16 %v661, %v657
    %v1046 = vpack.c.b16 %v662, %v658
    %v1047 = vpack.c.b16 %v667, %v663
    %v1048 = vpack.c.b16 %v668, %v664
    %v1049 = vpack.c.b16 %v669, %v665
    %v1050 = vpack.c.b16 %v670, %v666
    %v1051 = vpack.c.b16 %v675, %v671
    %v1052 = vpack.c.b16 %v676, %v672
    %v1053 = vpack.c.b16 %v677, %v673
    %v1054 = vpack.c.b16 %v678, %v674
    %v1055 = vpack.c.b16 %v683, %v679
    %v1056 = vpack.c.b16 %v684, %v680
    %v1057 = vpack.c.b16 %v685, %v681
    %v1058 = vpack.c.b16 %v686, %v682
    %v1059 = vpack.c.b16 %v691, %v687
    %v1060 = vpack.c.b16 %v692, %v688
    %v1061 = vpack.c.b16 %v693, %v689
    %v1062 = vpack.c.b16 %v694, %v690
    %v1063 = vpack.c.b16 %v699, %v695
    %v1064 = vpack.c.b16 %v700, %v696
    %v1065 = vpack.c.b16 %v701, %v697
    %v1066 = vpack.c.b16 %v702, %v698
    %v1067 = vpack.c.b16 %v707, %v703
    %v1068 = vpack.c.b16 %v708, %v704
    %v1069 = vpack.c.b16 %v709, %v705
    %v1070 = vpack.c.b16 %v710, %v706
    %v1071 = vpack.c.b16 %v715, %v711
    %v1072 = vpack.c.b16 %v716, %v712
    %v1073 = vpack.c.b16 %v717, %v713
    %v1074 = vpack.c.b16 %v718, %v714
    %v1075 = vpack.c.b16 %v723, %v719
    %v1076 = vpack.c.b16 %v724, %v720
    %v1077 = vpack.c.b16 %v725, %v721
    %v1078 = vpack.c.b16 %v726, %v722
    %v1079 = vpack.c.b16 %v731, %v727
    %v1080 = vpack.c.b16 %v732, %v728
    %v1081 = vpack.c.b16 %v733, %v729
    %v1082 = vpack.c.b16 %v734, %v730
    %v1083 = vpack.c.b16 %v739, %v735
    %v1084 = vpack.c.b16 %v740, %v736
    %v1085 = vpack.c.b16 %v741, %v737
    %v1086 = vpack.c.b16 %v742, %v738
    %v1087 = vpack.c.b16 %v747, %v743
    %v1088 = vpack.c.b16 %v748, %v744
    %v1089 = vpack.c.b16 %v749, %v745
    %v1090 = vpack.c.b16 %v750, %v746
    %v1091 = vpack.c.b16 %v755, %v751
    %v1092 = vpack.c.b16 %v756, %v752
    %v1093 = vpack.c.b16 %v757, %v753
    %v1094 = vpack.c.b16 %v758, %v754
    %v1095 = vpack.c.b16 %v763, %v759
    %v1096 = vpack.c.b16 %v764, %v760
    %v1097 = vpack.c.b16 %v765, %v761
    %v1098 = vpack.c.b16 %v766, %v762
    %v1099 = vpack.c.b16 %v771, %v767
    %v1100 = vpack.c.b16 %v772, %v768
    %v1101 = vpack.c.b16 %v773, %v769
    %v1102 = vpack.c.b16 %v774, %v770
    %v1103 = vpack.c.b16 %v779, %v775
    %v1104 = vpack.c.b16 %v780, %v776
    %v1105 = vpack.c.b16 %v781, %v777
    %v1106 = vpack.c.b16 %v782, %v778
    %v1107 = vpack.c.b16 %v787, %v783
    %v1108 = vpack.c.b16 %v788, %v784
    %v1109 = vpack.c.b16 %v789, %v785
    %v1110 = vpack.c.b16 %v790, %v786
    %v1111 = vpack.c.b16 %v795, %v791
    %v1112 = vpack.c.b16 %v796, %v792
    %v1113 = vpack.c.b16 %v797, %v793
    %v1114 = vpack.c.b16 %v798, %v794
    %v1115 = vpack.c.b16 %v803, %v799
    %v1116 = vpack.c.b16 %v804, %v800
    %v1117 = vpack.c.b16 %v805, %v801
    %v1118 = vpack.c.b16 %v806, %v802
    %v1119 = vpack.c.b16 %v811, %v807
    %v1120 = vpack.c.b16 %v812, %v808
    %v1121 = vpack.c.b16 %v813, %v809
    %v1122 = vpack.c.b16 %v814, %v810
    %v1123 = vpack.c.b16 %v819, %v815
    %v1124 = vpack.c.b16 %v820, %v816
    %v1125 = vpack.c.b16 %v821, %v817
    %v1126 = vpack.c.b16 %v822, %v818
    %v1127 = vpack.c.b16 %v827, %v823
    %v1128 = vpack.c.b16 %v828, %v824
    %v1129 = vpack.c.b16 %v829, %v825
    %v1130 = vpack.c.b16 %v830, %v826
    %v1131 = vpack.c.b16 %v835, %v831
    %v1132 = vpack.c.b16 %v836, %v832
    %v1133 = vpack.c.b16 %v837, %v833
    %v1134 = vpack.c.b16 %v838, %v834
    %v1135 = vpack.c.b16 %v843, %v839
    %v1136 = vpack.c.b16 %v844, %v840
    %v1137 = vpack.c.b16 %v845, %v841
    %v1138 = vpack.c.b16 %v846, %v842
    %v1139 = vpack.c.b16 %v851, %v847
    %v1140 = vpack.c.b16 %v852, %v848
    %v1141 = vpack.c.b16 %v853, %v849
    %v1142 = vpack.c.b16 %v854, %v850
    %v1143 = vpack.c.b16 %v859, %v855
    %v1144 = vpack.c.b16 %v860, %v856
    %v1145 = vpack.c.b16 %v861, %v857
    %v1146 = vpack.c.b16 %v862, %v858
    %v1147 = vpack.c.b16 %v867, %v863
    %v1148 = vpack.c.b16 %v868, %v864
    %v1149 = vpack.c.b16 %v869, %v865
    %v1150 = vpack.c.b16 %v870, %v866
    %v1151 = vpack.c.b16 %v875, %v871
    %v1152 = vpack.c.b16 %v876, %v872
    %v1153 = vpack.c.b16 %v877, %v873
    %v1154 = vpack.c.b16 %v878, %v874
    %v1155 = vpack.c.b16 %v883, %v879
    %v1156 = vpack.c.b16 %v884, %v880
    %v1157 = vpack.c.b16 %v885, %v881
    %v1158 = vpack.c.b16 %v886, %v882
    %v1159 = vpack.c.b16 %v891, %v887
    %v1160 = vpack.c.b16 %v892, %v888
    %v1161 = vpack.c.b16 %v893, %v889
    %v1162 = vpack.c.b16 %v894, %v890
    %v1163 = vpack.c.b16 %v899, %v895
    %v1164 = vpack.c.b16 %v900, %v896
    %v1165 = vpack.c.b16 %v901, %v897
    %v1166 = vpack.c.b16 %v902, %v898
    %v1167 = vpack.c.b16 %v907, %v903
    %v1168 = vpack.c.b16 %v908, %v904
    %v1169 = vpack.c.b16 %v909, %v905
    %v1170 = vpack.c.b16 %v910, %v906
    %v1171 = vpack.c.b16 %v915, %v911
    %v1172 = vpack.c.b16 %v916, %v912
    %v1173 = vpack.c.b16 %v917, %v913
    %v1174 = vpack.c.b16 %v918, %v914
    %v1175 = vpack.c.b16 %v923, %v919
    %v1176 = vpack.c.b16 %v924, %v920
    %v1177 = vpack.c.b16 %v925, %v921
    %v1178 = vpack.c.b16 %v926, %v922
    %v1179 = vpack.c.b16 %v931, %v927
    %v1180 = vpack.c.b16 %v932, %v928
    %v1181 = vpack.c.b16 %v933, %v929
    %v1182 = vpack.c.b16 %v934, %v930
    %v1183 = vpack.c.b16 %v939, %v935
    %v1184 = vpack.c.b16 %v940, %v936
    %v1185 = vpack.c.b16 %v941, %v937
    %v1186 = vpack.c.b16 %v942, %v938
    %v1187 = vpack.c.b16 %v947, %v943
    %v1188 = vpack.c.b16 %v948, %v944
    %v1189 = vpack.c.b16 %v949, %v945
    %v1190 = vpack.c.b16 %v950, %v946
    %v1191 = vpack.c.b16 %v955, %v951
    %v1192 = vpack.c.b16 %v956, %v952
    %v1193 = vpack.c.b16 %v957, %v953
    %v1194 = vpack.c.b16 %v958, %v954
    %v1195 = vpack.c.b16 %v963, %v959
    %v1196 = vpack.c.b16 %v964, %v960
    %v1197 = vpack.c.b16 %v965, %v961
    %v1198 = vpack.c.b16 %v966, %v962
    %v1199 = vpack.c.b16 %v971, %v967
    %v1200 = vpack.c.b16 %v972, %v968
    %v1201 = vpack.c.b16 %v973, %v969
    %v1202 = vpack.c.b16 %v974, %v970
    %v1203 = vpack.c.b16 %v979, %v975
    %v1204 = vpack.c.b16 %v980, %v976
    %v1205 = vpack.c.b16 %v981, %v977
    %v1206 = vpack.c.b16 %v982, %v978
    %v1207 = vpack.c.b16 %v987, %v983
    %v1208 = vpack.c.b16 %v988, %v984
    %v1209 = vpack.c.b16 %v989, %v985
    %v1210 = vpack.c.b16 %v990, %v986
    %v1211 = vpack.c.b16 %v995, %v991
    %v1212 = vpack.c.b16 %v996, %v992
    %v1213 = vpack.c.b16 %v997, %v993
    %v1214 = vpack.c.b16 %v998, %v994
    %v1215 = vpack.c.b16 %v1003, %v999
    %v1216 = vpack.c.b16 %v1004, %v1000
    %v1217 = vpack.c.b16 %v1005, %v1001
    %v1218 = vpack.c.b16 %v1006, %v1002
    %v1219 = vpack.c.b16 %v1011, %v1007
    %v1220 = vpack.c.b16 %v1012, %v1008
    %v1221 = vpack.c.b16 %v1013, %v1009
    %v1222 = vpack.c.b16 %v1014, %v1010
    %v1223 = vpack.c.b16 %v1019, %v1015
    %v1224 = vpack.c.b16 %v1020, %v1016
    %v1225 = vpack.c.b16 %v1021, %v1017
    %v1226 = vpack.c.b16 %v1022, %v1018
    %v1227 = vpack.c.b16 %v1027, %v1023
    %v1228 = vpack.c.b16 %v1028, %v1024
    %v1229 = vpack.c.b16 %v1029, %v1025
    %v1230 = vpack.c.b16 %v1030, %v1026
    %v1231 = vpack.c.b16 %v1035, %v1031
    %v1232 = vpack.c.b16 %v1036, %v1032
    %v1233 = vpack.c.b16 %v1037, %v1033
    %v1234 = vpack.c.b16 %v1038, %v1034
    %vm1431 = vcmask 130048
    %v1433 = vsel %vm1431, %v183, 0
    %v1436 = vsel %vm1431, %v190, 0
    %v1439 = vsel %vm1431, %v197, 0
    %v1442 = vsel %vm1431, %v204, 0
    %v1445 = vsel %vm1431, %v211, 0
    %v1448 = vsel %vm1431, %v218, 0
    %v1451 = vsel %vm1431, %v225, 0
    %v1454 = vsel %vm1431, %v232, 0
    %1456 = vmatprep.subr.bf16.mxu0 %v1040
    %1457 = vmatpush1.bf16.msra.mxu0 %v1039
    %1458 = vmatprep.subr.bf16.mxu0 %v1044
    %1459 = vmatpush1.bf16.msra.mxu0 %v1043
    %1460 = vmatprep.subr.bf16.mxu0 %v1048
    %1461 = vmatpush1.bf16.msra.mxu0 %v1047
    %1462 = vmatprep.subr.bf16.mxu0 %v1052
    %1463 = vmatpush1.bf16.msra.mxu0 %v1051
    %1464 = vmatprep.subr.bf16.mxu0 %v1056
    %1465 = vmatpush1.bf16.msra.mxu0 %v1055
    %1466 = vmatprep.subr.bf16.mxu0 %v1060
    %1467 = vmatpush1.bf16.msra.mxu0 %v1059
    %1468 = vmatprep.subr.bf16.mxu0 %v1064
    %1469 = vmatpush1.bf16.msra.mxu0 %v1063
    %1470 = vmatprep.subr.bf16.mxu0 %v1068
    %1471 = vmatpush1.bf16.msra.mxu0 %v1067
    %1472 = vmatprep.subr.bf16.mxu0 %v1072
    %1473 = vmatpush1.bf16.msra.mxu0 %v1071
    %1474 = vmatprep.subr.bf16.mxu0 %v1076
    %1475 = vmatpush1.bf16.msra.mxu0 %v1075
    %1476 = vmatprep.subr.bf16.mxu0 %v1080
    %1477 = vmatpush1.bf16.msra.mxu0 %v1079
    %1478 = vmatprep.subr.bf16.mxu0 %v1084
    %1479 = vmatpush1.bf16.msra.mxu0 %v1083
    %1480 = vmatprep.subr.bf16.mxu0 %v1088
    %1481 = vmatpush1.bf16.msra.mxu0 %v1087
    %1482 = vmatprep.subr.bf16.mxu0 %v1092
    %1483 = vmatpush1.bf16.msra.mxu0 %v1091
    %1484 = vmatprep.subr.bf16.mxu0 %v1096
    %1485 = vmatpush1.bf16.msra.mxu0 %v1095
    %1486 = vmatprep.subr.bf16.mxu0 %v1100
    %1487 = vmatpush1.bf16.msra.mxu0 %v1099
    %1488 = vmatprep.mubr.bf16.mxu0 %v178
    %1489 = vmatmul.mubr.bf16.gmra.mrb[0].mxu0 %v177
    %v1490 = vpop.f32.mrb[0].mxu0
    %v1491 = vadd.f32 %v434, %v1490
    %v1492 = vpop.f32.mrb[0].mxu0
    %v1493 = vadd.f32 %v438, %v1492
    %v1494 = vpop.f32.mrb[0].mxu0
    %v1495 = vadd.f32 %v434, %v1494
    %v1496 = vpop.f32.mrb[0].mxu0
    %v1497 = vadd.f32 %v438, %v1496
    %1498 = vmatprep.mubr.bf16.mxu0 %v185
    %1499 = vmatmul.mubr.bf16.gmra.mrb[0].mxu0 %v184
    %v1500 = vpop.f32.mrb[0].mxu0
    %v1501 = vadd.f32 %v434, %v1500
    %v1502 = vpop.f32.mrb[0].mxu0
    %v1503 = vadd.f32 %v438, %v1502
    %v1504 = vpop.f32.mrb[0].mxu0
    %v1505 = vadd.f32 %v434, %v1504
    %v1506 = vpop.f32.mrb[0].mxu0
    %v1507 = vadd.f32 %v438, %v1506
    %1508 = vmatprep.mubr.bf16.mxu0 %v192
    %1509 = vmatmul.mubr.bf16.gmra.mrb[0].mxu0 %v191
    %v1510 = vpop.f32.mrb[0].mxu0
    %v1511 = vadd.f32 %v434, %v1510
    %v1512 = vpop.f32.mrb[0].mxu0
    %v1513 = vadd.f32 %v438, %v1512
    %v1514 = vpop.f32.mrb[0].mxu0
    %v1515 = vadd.f32 %v434, %v1514
    %v1516 = vpop.f32.mrb[0].mxu0
    %v1517 = vadd.f32 %v438, %v1516
    %1518 = vmatprep.mubr.bf16.mxu0 %v199
    %1519 = vmatmul.mubr.bf16.gmra.mrb[0].mxu0 %v198
    %v1520 = vpop.f32.mrb[0].mxu0
    %v1521 = vadd.f32 %v434, %v1520
    %v1522 = vpop.f32.mrb[0].mxu0
    %v1523 = vadd.f32 %v438, %v1522
    %v1524 = vpop.f32.mrb[0].mxu0
    %v1525 = vadd.f32 %v434, %v1524
    %v1526 = vpop.f32.mrb[0].mxu0
    %v1527 = vadd.f32 %v438, %v1526
    %1528 = vmatprep.mubr.bf16.mxu0 %v206
    %1529 = vmatmul.mubr.bf16.gmra.mrb[0].mxu0 %v205
    %v1530 = vpop.f32.mrb[0].mxu0
    %v1531 = vadd.f32 %v434, %v1530
    %v1532 = vpop.f32.mrb[0].mxu0
    %v1533 = vadd.f32 %v438, %v1532
    %v1534 = vpop.f32.mrb[0].mxu0
    %v1535 = vadd.f32 %v434, %v1534
    %v1536 = vpop.f32.mrb[0].mxu0
    %v1537 = vadd.f32 %v438, %v1536
    %1538 = vmatprep.mubr.bf16.mxu0 %v213
    %1539 = vmatmul.mubr.bf16.gmra.mrb[0].mxu0 %v212
    %v1540 = vpop.f32.mrb[0].mxu0
    %v1541 = vadd.f32 %v434, %v1540
    %v1542 = vpop.f32.mrb[0].mxu0
    %v1543 = vadd.f32 %v438, %v1542
    %v1544 = vpop.f32.mrb[0].mxu0
    %v1545 = vadd.f32 %v434, %v1544
    %v1546 = vpop.f32.mrb[0].mxu0
    %v1547 = vadd.f32 %v438, %v1546
    %1548 = vmatprep.mubr.bf16.mxu0 %v220
    %1549 = vmatmul.mubr.bf16.gmra.mrb[0].mxu0 %v219
    %v1550 = vpop.f32.mrb[0].mxu0
    %v1551 = vadd.f32 %v434, %v1550
    %v1552 = vpop.f32.mrb[0].mxu0
    %v1553 = vadd.f32 %v438, %v1552
    %v1554 = vpop.f32.mrb[0].mxu0
    %v1555 = vadd.f32 %v434, %v1554
    %v1556 = vpop.f32.mrb[0].mxu0
    %v1557 = vadd.f32 %v438, %v1556
    %1558 = vmatprep.mubr.bf16.mxu0 %v227
    %1559 = vmatmul.mubr.bf16.gmra.mrb[0].mxu0 %v226
    %v1560 = vpop.f32.mrb[0].mxu0
    %v1561 = vadd.f32 %v434, %v1560
    %v1562 = vpop.f32.mrb[0].mxu0
    %v1563 = vadd.f32 %v438, %v1562
    %v1564 = vpop.f32.mrb[0].mxu0
    %v1565 = vadd.f32 %v434, %v1564
    %v1566 = vpop.f32.mrb[0].mxu0
    %v1567 = vadd.f32 %v438, %v1566
    %1568 = vdwg.mxu0
    %1569 = vmatprep.subr.bf16.mxu0 %v1104
    %1570 = vmatpush1.bf16.msra.mxu0 %v1103
    %1571 = vmatprep.subr.bf16.mxu0 %v1108
    %1572 = vmatpush1.bf16.msra.mxu0 %v1107
    %1573 = vmatprep.subr.bf16.mxu0 %v1112
    %1574 = vmatpush1.bf16.msra.mxu0 %v1111
    %1575 = vmatprep.subr.bf16.mxu0 %v1116
    %1576 = vmatpush1.bf16.msra.mxu0 %v1115
    %1577 = vmatprep.subr.bf16.mxu0 %v1120
    %1578 = vmatpush1.bf16.msra.mxu0 %v1119
    %1579 = vmatprep.subr.bf16.mxu0 %v1124
    %1580 = vmatpush1.bf16.msra.mxu0 %v1123
    %1581 = vmatprep.subr.bf16.mxu0 %v1128
    %1582 = vmatpush1.bf16.msra.mxu0 %v1127
    %1583 = vmatprep.subr.bf16.mxu0 %v1132
    %1584 = vmatpush1.bf16.msra.mxu0 %v1131
    %1585 = vmatprep.subr.bf16.mxu0 %v1136
    %1586 = vmatpush1.bf16.msra.mxu0 %v1135
    %1587 = vmatprep.subr.bf16.mxu0 %v1140
    %1588 = vmatpush1.bf16.msra.mxu0 %v1139
    %1589 = vmatprep.subr.bf16.mxu0 %v1144
    %1590 = vmatpush1.bf16.msra.mxu0 %v1143
    %1591 = vmatprep.subr.bf16.mxu0 %v1148
    %1592 = vmatpush1.bf16.msra.mxu0 %v1147
    %1593 = vmatprep.subr.bf16.mxu0 %v1152
    %1594 = vmatpush1.bf16.msra.mxu0 %v1151
    %1595 = vmatprep.subr.bf16.mxu0 %v1156
    %1596 = vmatpush1.bf16.msra.mxu0 %v1155
    %1597 = vmatprep.subr.bf16.mxu0 %v1160
    %1598 = vmatpush1.bf16.msra.mxu0 %v1159
    %1599 = vmatprep.subr.bf16.mxu0 %v1164
    %1600 = vmatpush1.bf16.msra.mxu0 %v1163
    %1601 = vmatprep.mubr.bf16.mxu0 %v180
    %1602 = vmatmul.mubr.bf16.gmra.mrb[0].mxu0 %v179
    %v1603 = vpop.f32.mrb[0].mxu0
    %v1604 = vadd.f32 %v1491, %v1603
    %v1605 = vpop.f32.mrb[0].mxu0
    %v1606 = vadd.f32 %v1493, %v1605
    %v1607 = vpop.f32.mrb[0].mxu0
    %v1608 = vadd.f32 %v1495, %v1607
    %v1609 = vpop.f32.mrb[0].mxu0
    %v1610 = vadd.f32 %v1497, %v1609
    %1611 = vmatprep.mubr.bf16.mxu0 %v187
    %1612 = vmatmul.mubr.bf16.gmra.mrb[0].mxu0 %v186
    %v1613 = vpop.f32.mrb[0].mxu0
    %v1614 = vadd.f32 %v1501, %v1613
    %v1615 = vpop.f32.mrb[0].mxu0
    %v1616 = vadd.f32 %v1503, %v1615
    %v1617 = vpop.f32.mrb[0].mxu0
    %v1618 = vadd.f32 %v1505, %v1617
    %v1619 = vpop.f32.mrb[0].mxu0
    %v1620 = vadd.f32 %v1507, %v1619
    %1621 = vmatprep.mubr.bf16.mxu0 %v194
    %1622 = vmatmul.mubr.bf16.gmra.mrb[0].mxu0 %v193
    %v1623 = vpop.f32.mrb[0].mxu0
    %v1624 = vadd.f32 %v1511, %v1623
    %v1625 = vpop.f32.mrb[0].mxu0
    %v1626 = vadd.f32 %v1513, %v1625
    %v1627 = vpop.f32.mrb[0].mxu0
    %v1628 = vadd.f32 %v1515, %v1627
    %v1629 = vpop.f32.mrb[0].mxu0
    %v1630 = vadd.f32 %v1517, %v1629
    %1631 = vmatprep.mubr.bf16.mxu0 %v201
    %1632 = vmatmul.mubr.bf16.gmra.mrb[0].mxu0 %v200
    %v1633 = vpop.f32.mrb[0].mxu0
    %v1634 = vadd.f32 %v1521, %v1633
    %v1635 = vpop.f32.mrb[0].mxu0
    %v1636 = vadd.f32 %v1523, %v1635
    %v1637 = vpop.f32.mrb[0].mxu0
    %v1638 = vadd.f32 %v1525, %v1637
    %v1639 = vpop.f32.mrb[0].mxu0
    %v1640 = vadd.f32 %v1527, %v1639
    %1641 = vmatprep.mubr.bf16.mxu0 %v208
    %1642 = vmatmul.mubr.bf16.gmra.mrb[0].mxu0 %v207
    %v1643 = vpop.f32.mrb[0].mxu0
    %v1644 = vadd.f32 %v1531, %v1643
    %v1645 = vpop.f32.mrb[0].mxu0
    %v1646 = vadd.f32 %v1533, %v1645
    %v1647 = vpop.f32.mrb[0].mxu0
    %v1648 = vadd.f32 %v1535, %v1647
    %v1649 = vpop.f32.mrb[0].mxu0
    %v1650 = vadd.f32 %v1537, %v1649
    %1651 = vmatprep.mubr.bf16.mxu0 %v215
    %1652 = vmatmul.mubr.bf16.gmra.mrb[0].mxu0 %v214
    %v1653 = vpop.f32.mrb[0].mxu0
    %v1654 = vadd.f32 %v1541, %v1653
    %v1655 = vpop.f32.mrb[0].mxu0
    %v1656 = vadd.f32 %v1543, %v1655
    %v1657 = vpop.f32.mrb[0].mxu0
    %v1658 = vadd.f32 %v1545, %v1657
    %v1659 = vpop.f32.mrb[0].mxu0
    %v1660 = vadd.f32 %v1547, %v1659
    %1661 = vmatprep.mubr.bf16.mxu0 %v222
    %1662 = vmatmul.mubr.bf16.gmra.mrb[0].mxu0 %v221
    %v1663 = vpop.f32.mrb[0].mxu0
    %v1664 = vadd.f32 %v1551, %v1663
    %v1665 = vpop.f32.mrb[0].mxu0
    %v1666 = vadd.f32 %v1553, %v1665
    %v1667 = vpop.f32.mrb[0].mxu0
    %v1668 = vadd.f32 %v1555, %v1667
    %v1669 = vpop.f32.mrb[0].mxu0
    %v1670 = vadd.f32 %v1557, %v1669
    %1671 = vmatprep.mubr.bf16.mxu0 %v229
    %1672 = vmatmul.mubr.bf16.gmra.mrb[0].mxu0 %v228
    %v1673 = vpop.f32.mrb[0].mxu0
    %v1674 = vadd.f32 %v1561, %v1673
    %v1675 = vpop.f32.mrb[0].mxu0
    %v1676 = vadd.f32 %v1563, %v1675
    %v1677 = vpop.f32.mrb[0].mxu0
    %v1678 = vadd.f32 %v1565, %v1677
    %v1679 = vpop.f32.mrb[0].mxu0
    %v1680 = vadd.f32 %v1567, %v1679
    %1681 = vdwg.mxu0
    %1682 = vmatprep.subr.bf16.mxu0 %v1168
    %1683 = vmatpush1.bf16.msra.mxu0 %v1167
    %1684 = vmatprep.subr.bf16.mxu0 %v1172
    %1685 = vmatpush1.bf16.msra.mxu0 %v1171
    %1686 = vmatprep.subr.bf16.mxu0 %v1176
    %1687 = vmatpush1.bf16.msra.mxu0 %v1175
    %1688 = vmatprep.subr.bf16.mxu0 %v1180
    %1689 = vmatpush1.bf16.msra.mxu0 %v1179
    %1690 = vmatprep.subr.bf16.mxu0 %v1184
    %1691 = vmatpush1.bf16.msra.mxu0 %v1183
    %1692 = vmatprep.subr.bf16.mxu0 %v1188
    %1693 = vmatpush1.bf16.msra.mxu0 %v1187
    %1694 = vmatprep.subr.bf16.mxu0 %v1192
    %1695 = vmatpush1.bf16.msra.mxu0 %v1191
    %1696 = vmatprep.subr.bf16.mxu0 %v1196
    %1697 = vmatpush1.bf16.msra.mxu0 %v1195
    %1698 = vmatprep.subr.bf16.mxu0 %v1200
    %1699 = vmatpush1.bf16.msra.mxu0 %v1199
    %1700 = vmatprep.subr.bf16.mxu0 %v1204
    %1701 = vmatpush1.bf16.msra.mxu0 %v1203
    %1702 = vmatprep.subr.bf16.mxu0 %v1208
    %1703 = vmatpush1.bf16.msra.mxu0 %v1207
    %1704 = vmatprep.subr.bf16.mxu0 %v1212
    %1705 = vmatpush1.bf16.msra.mxu0 %v1211
    %1706 = vmatprep.subr.bf16.mxu0 %v1216
    %1707 = vmatpush1.bf16.msra.mxu0 %v1215
    %1708 = vmatprep.subr.bf16.mxu0 %v1220
    %1709 = vmatpush1.bf16.msra.mxu0 %v1219
    %1710 = vmatprep.subr.bf16.mxu0 %v1224
    %1711 = vmatpush1.bf16.msra.mxu0 %v1223
    %1712 = vmatprep.subr.bf16.mxu0 %v1228
    %1713 = vmatpush1.bf16.msra.mxu0 %v1227
    %1714 = vmatprep.mubr.bf16.mxu0 %v182
    %1715 = vmatmul.mubr.bf16.gmra.mrb[0].mxu0 %v181
    %v1716 = vpop.f32.mrb[0].mxu0
    %v1717 = vadd.f32 %v1604, %v1716
    %v1718 = vpop.f32.mrb[0].mxu0
    %v1719 = vadd.f32 %v1606, %v1718
    %v1720 = vpop.f32.mrb[0].mxu0
    %v1721 = vadd.f32 %v1608, %v1720
    %v1722 = vpop.f32.mrb[0].mxu0
    %v1723 = vadd.f32 %v1610, %v1722
    %1724 = vmatprep.mubr.bf16.mxu0 %v189
    %1725 = vmatmul.mubr.bf16.gmra.mrb[0].mxu0 %v188
    %v1726 = vpop.f32.mrb[0].mxu0
    %v1727 = vadd.f32 %v1614, %v1726
    %v1728 = vpop.f32.mrb[0].mxu0
    %v1729 = vadd.f32 %v1616, %v1728
    %v1730 = vpop.f32.mrb[0].mxu0
    %v1731 = vadd.f32 %v1618, %v1730
    %v1732 = vpop.f32.mrb[0].mxu0
    %v1733 = vadd.f32 %v1620, %v1732
    %1734 = vmatprep.mubr.bf16.mxu0 %v196
    %1735 = vmatmul.mubr.bf16.gmra.mrb[0].mxu0 %v195
    %v1736 = vpop.f32.mrb[0].mxu0
    %v1737 = vadd.f32 %v1624, %v1736
    %v1738 = vpop.f32.mrb[0].mxu0
    %v1739 = vadd.f32 %v1626, %v1738
    %v1740 = vpop.f32.mrb[0].mxu0
    %v1741 = vadd.f32 %v1628, %v1740
    %v1742 = vpop.f32.mrb[0].mxu0
    %v1743 = vadd.f32 %v1630, %v1742
    %1744 = vmatprep.mubr.bf16.mxu0 %v203
    %1745 = vmatmul.mubr.bf16.gmra.mrb[0].mxu0 %v202
    %v1746 = vpop.f32.mrb[0].mxu0
    %v1747 = vadd.f32 %v1634, %v1746
    %v1748 = vpop.f32.mrb[0].mxu0
    %v1749 = vadd.f32 %v1636, %v1748
    %v1750 = vpop.f32.mrb[0].mxu0
    %v1751 = vadd.f32 %v1638, %v1750
    %v1752 = vpop.f32.mrb[0].mxu0
    %v1753 = vadd.f32 %v1640, %v1752
    %1754 = vmatprep.mubr.bf16.mxu0 %v210
    %1755 = vmatmul.mubr.bf16.gmra.mrb[0].mxu0 %v209
    %v1756 = vpop.f32.mrb[0].mxu0
    %v1757 = vadd.f32 %v1644, %v1756
    %v1758 = vpop.f32.mrb[0].mxu0
    %v1759 = vadd.f32 %v1646, %v1758
    %v1760 = vpop.f32.mrb[0].mxu0
    %v1761 = vadd.f32 %v1648, %v1760
    %v1762 = vpop.f32.mrb[0].mxu0
    %v1763 = vadd.f32 %v1650, %v1762
    %1764 = vmatprep.mubr.bf16.mxu0 %v217
    %1765 = vmatmul.mubr.bf16.gmra.mrb[0].mxu0 %v216
    %v1766 = vpop.f32.mrb[0].mxu0
    %v1767 = vadd.f32 %v1654, %v1766
    %v1768 = vpop.f32.mrb[0].mxu0
    %v1769 = vadd.f32 %v1656, %v1768
    %v1770 = vpop.f32.mrb[0].mxu0
    %v1771 = vadd.f32 %v1658, %v1770
    %v1772 = vpop.f32.mrb[0].mxu0
    %v1773 = vadd.f32 %v1660, %v1772
    %1774 = vmatprep.mubr.bf16.mxu0 %v224
    %1775 = vmatmul.mubr.bf16.gmra.mrb[0].mxu0 %v223
    %v1776 = vpop.f32.mrb[0].mxu0
    %v1777 = vadd.f32 %v1664, %v1776
    %v1778 = vpop.f32.mrb[0].mxu0
    %v1779 = vadd.f32 %v1666, %v1778
    %v1780 = vpop.f32.mrb[0].mxu0
    %v1781 = vadd.f32 %v1668, %v1780
    %v1782 = vpop.f32.mrb[0].mxu0
    %v1783 = vadd.f32 %v1670, %v1782
    %1784 = vmatprep.mubr.bf16.mxu0 %v231
    %1785 = vmatmul.mubr.bf16.gmra.mrb[0].mxu0 %v230
    %v1786 = vpop.f32.mrb[0].mxu0
    %v1787 = vadd.f32 %v1674, %v1786
    %v1788 = vpop.f32.mrb[0].mxu0
    %v1789 = vadd.f32 %v1676, %v1788
    %v1790 = vpop.f32.mrb[0].mxu0
    %v1791 = vadd.f32 %v1678, %v1790
    %v1792 = vpop.f32.mrb[0].mxu0
    %v1793 = vadd.f32 %v1680, %v1792
    %1794 = vdwg.mxu0
    %1795 = vmatprep.subr.bf16.mxu0 %v1232
    %1796 = vmatpush1.bf16.msra.mxu0 %v1231
    %1797 = vmatprep.subr.bf16.mxu0 0
    %1798 = vmatpush1.bf16.msra.mxu0 0
    %1799 = vmatprep.subr.bf16.mxu0 0
    %1800 = vmatpush1.bf16.msra.mxu0 0
    %1801 = vmatprep.subr.bf16.mxu0 0
    %1802 = vmatpush1.bf16.msra.mxu0 0
    %1803 = vmatprep.subr.bf16.mxu0 0
    %1804 = vmatpush1.bf16.msra.mxu0 0
    %1805 = vmatprep.subr.bf16.mxu0 0
    %1806 = vmatpush1.bf16.msra.mxu0 0
    %1807 = vmatprep.subr.bf16.mxu0 0
    %1808 = vmatpush1.bf16.msra.mxu0 0
    %1809 = vmatprep.subr.bf16.mxu0 0
    %1810 = vmatpush1.bf16.msra.mxu0 0
    %1811 = vmatprep.subr.bf16.mxu0 0
    %1812 = vmatpush1.bf16.msra.mxu0 0
    %1813 = vmatprep.subr.bf16.mxu0 0
    %1814 = vmatpush1.bf16.msra.mxu0 0
    %1815 = vmatprep.subr.bf16.mxu0 0
    %1816 = vmatpush1.bf16.msra.mxu0 0
    %1817 = vmatprep.subr.bf16.mxu0 0
    %1818 = vmatpush1.bf16.msra.mxu0 0
    %1819 = vmatprep.subr.bf16.mxu0 0
    %1820 = vmatpush1.bf16.msra.mxu0 0
    %1821 = vmatprep.subr.bf16.mxu0 0
    %1822 = vmatpush1.bf16.msra.mxu0 0
    %1823 = vmatprep.subr.bf16.mxu0 0
    %1824 = vmatpush1.bf16.msra.mxu0 0
    %1825 = vmatprep.subr.bf16.mxu0 0
    %1826 = vmatpush1.bf16.msra.mxu0 0
    %1827 = vmatprep.mubr.bf16.mxu0 0
    %1828 = vmatmul.mubr.bf16.gmra.mrb[0].mxu0 %v1433
    %v1829 = vpop.f32.mrb[0].mxu0
    %v1830 = vadd.f32 %v1717, %v1829
    %v1831 = vpop.f32.mrb[0].mxu0
    %v1832 = vadd.f32 %v1719, %v1831
    %v1833 = vpop.f32.mrb[0].mxu0
    %v1834 = vadd.f32 %v1721, %v1833
    %v1835 = vpop.f32.mrb[0].mxu0
    %v1836 = vadd.f32 %v1723, %v1835
    %1837 = vmatprep.mubr.bf16.mxu0 0
    %1838 = vmatmul.mubr.bf16.gmra.mrb[0].mxu0 %v1436
    %v1839 = vpop.f32.mrb[0].mxu0
    %v1840 = vadd.f32 %v1727, %v1839
    %v1841 = vpop.f32.mrb[0].mxu0
    %v1842 = vadd.f32 %v1729, %v1841
    %v1843 = vpop.f32.mrb[0].mxu0
    %v1844 = vadd.f32 %v1731, %v1843
    %v1845 = vpop.f32.mrb[0].mxu0
    %v1846 = vadd.f32 %v1733, %v1845
    %1847 = vmatprep.mubr.bf16.mxu0 0
    %1848 = vmatmul.mubr.bf16.gmra.mrb[0].mxu0 %v1439
    %v1849 = vpop.f32.mrb[0].mxu0
    %v1850 = vadd.f32 %v1737, %v1849
    %v1851 = vpop.f32.mrb[0].mxu0
    %v1852 = vadd.f32 %v1739, %v1851
    %v1853 = vpop.f32.mrb[0].mxu0
    %v1854 = vadd.f32 %v1741, %v1853
    %v1855 = vpop.f32.mrb[0].mxu0
    %v1856 = vadd.f32 %v1743, %v1855
    %1857 = vmatprep.mubr.bf16.mxu0 0
    %1858 = vmatmul.mubr.bf16.gmra.mrb[0].mxu0 %v1442
    %v1859 = vpop.f32.mrb[0].mxu0
    %v1860 = vadd.f32 %v1747, %v1859
    %v1861 = vpop.f32.mrb[0].mxu0
    %v1862 = vadd.f32 %v1749, %v1861
    %v1863 = vpop.f32.mrb[0].mxu0
    %v1864 = vadd.f32 %v1751, %v1863
    %v1865 = vpop.f32.mrb[0].mxu0
    %v1866 = vadd.f32 %v1753, %v1865
    %1867 = vmatprep.mubr.bf16.mxu0 0
    %1868 = vmatmul.mubr.bf16.gmra.mrb[0].mxu0 %v1445
    %v1869 = vpop.f32.mrb[0].mxu0
    %v1870 = vadd.f32 %v1757, %v1869
    %v1871 = vpop.f32.mrb[0].mxu0
    %v1872 = vadd.f32 %v1759, %v1871
    %v1873 = vpop.f32.mrb[0].mxu0
    %v1874 = vadd.f32 %v1761, %v1873
    %v1875 = vpop.f32.mrb[0].mxu0
    %v1876 = vadd.f32 %v1763, %v1875
    %1877 = vmatprep.mubr.bf16.mxu0 0
    %1878 = vmatmul.mubr.bf16.gmra.mrb[0].mxu0 %v1448
    %v1879 = vpop.f32.mrb[0].mxu0
    %v1880 = vadd.f32 %v1767, %v1879
    %v1881 = vpop.f32.mrb[0].mxu0
    %v1882 = vadd.f32 %v1769, %v1881
    %v1883 = vpop.f32.mrb[0].mxu0
    %v1884 = vadd.f32 %v1771, %v1883
    %v1885 = vpop.f32.mrb[0].mxu0
    %v1886 = vadd.f32 %v1773, %v1885
    %1887 = vmatprep.mubr.bf16.mxu0 0
    %1888 = vmatmul.mubr.bf16.gmra.mrb[0].mxu0 %v1451
    %v1889 = vpop.f32.mrb[0].mxu0
    %v1890 = vadd.f32 %v1777, %v1889
    %v1891 = vpop.f32.mrb[0].mxu0
    %v1892 = vadd.f32 %v1779, %v1891
    %v1893 = vpop.f32.mrb[0].mxu0
    %v1894 = vadd.f32 %v1781, %v1893
    %v1895 = vpop.f32.mrb[0].mxu0
    %v1896 = vadd.f32 %v1783, %v1895
    %1897 = vmatprep.mubr.bf16.mxu0 0
    %1898 = vmatmul.mubr.bf16.gmra.mrb[0].mxu0 %v1454
    %v1899 = vpop.f32.mrb[0].mxu0
    %v1900 = vadd.f32 %v1787, %v1899
    %v1901 = vpop.f32.mrb[0].mxu0
    %v1902 = vadd.f32 %v1789, %v1901
    %v1903 = vpop.f32.mrb[0].mxu0
    %v1904 = vadd.f32 %v1791, %v1903
    %v1905 = vpop.f32.mrb[0].mxu0
    %v1906 = vadd.f32 %v1793, %v1905
    %1907 = vdwg.mxu0
    %1908 = vmatprep.subr.bf16.mxu0 %v1042
    %1909 = vmatpush1.bf16.msra.mxu0 %v1041
    %1910 = vmatprep.subr.bf16.mxu0 %v1046
    %1911 = vmatpush1.bf16.msra.mxu0 %v1045
    %1912 = vmatprep.subr.bf16.mxu0 %v1050
    %1913 = vmatpush1.bf16.msra.mxu0 %v1049
    %1914 = vmatprep.subr.bf16.mxu0 %v1054
    %1915 = vmatpush1.bf16.msra.mxu0 %v1053
    %1916 = vmatprep.subr.bf16.mxu0 %v1058
    %1917 = vmatpush1.bf16.msra.mxu0 %v1057
    %1918 = vmatprep.subr.bf16.mxu0 %v1062
    %1919 = vmatpush1.bf16.msra.mxu0 %v1061
    %1920 = vmatprep.subr.bf16.mxu0 %v1066
    %1921 = vmatpush1.bf16.msra.mxu0 %v1065
    %1922 = vmatprep.subr.bf16.mxu0 %v1070
    %1923 = vmatpush1.bf16.msra.mxu0 %v1069
    %1924 = vmatprep.subr.bf16.mxu0 %v1074
    %1925 = vmatpush1.bf16.msra.mxu0 %v1073
    %1926 = vmatprep.subr.bf16.mxu0 %v1078
    %1927 = vmatpush1.bf16.msra.mxu0 %v1077
    %1928 = vmatprep.subr.bf16.mxu0 %v1082
    %1929 = vmatpush1.bf16.msra.mxu0 %v1081
    %1930 = vmatprep.subr.bf16.mxu0 %v1086
    %1931 = vmatpush1.bf16.msra.mxu0 %v1085
    %1932 = vmatprep.subr.bf16.mxu0 %v1090
    %1933 = vmatpush1.bf16.msra.mxu0 %v1089
    %1934 = vmatprep.subr.bf16.mxu0 %v1094
    %1935 = vmatpush1.bf16.msra.mxu0 %v1093
    %1936 = vmatprep.subr.bf16.mxu0 %v1098
    %1937 = vmatpush1.bf16.msra.mxu0 %v1097
    %1938 = vmatprep.subr.bf16.mxu0 %v1102
    %1939 = vmatpush1.bf16.msra.mxu0 %v1101
    %1940 = vmatprep.mubr.bf16.mxu0 %v178
    %1941 = vmatmul.mubr.bf16.gmra.mrb[0].mxu0 %v177
    %v1942 = vpop.f32.mrb[0].mxu0
    %v1943 = vadd.f32 %v442, %v1942
    %v1944 = vpop.f32.mrb[0].mxu0
    %v1945 = vadd.f32 %v446, %v1944
    %v1946 = vpop.f32.mrb[0].mxu0
    %v1947 = vadd.f32 %v442, %v1946
    %v1948 = vpop.f32.mrb[0].mxu0
    %v1949 = vadd.f32 %v446, %v1948
    %1950 = vmatprep.mubr.bf16.mxu0 %v185
    %1951 = vmatmul.mubr.bf16.gmra.mrb[0].mxu0 %v184
    %v1952 = vpop.f32.mrb[0].mxu0
    %v1953 = vadd.f32 %v442, %v1952
    %v1954 = vpop.f32.mrb[0].mxu0
    %v1955 = vadd.f32 %v446, %v1954
    %v1956 = vpop.f32.mrb[0].mxu0
    %v1957 = vadd.f32 %v442, %v1956
    %v1958 = vpop.f32.mrb[0].mxu0
    %v1959 = vadd.f32 %v446, %v1958
    %1960 = vmatprep.mubr.bf16.mxu0 %v192
    %1961 = vmatmul.mubr.bf16.gmra.mrb[0].mxu0 %v191
    %v1962 = vpop.f32.mrb[0].mxu0
    %v1963 = vadd.f32 %v442, %v1962
    %v1964 = vpop.f32.mrb[0].mxu0
    %v1965 = vadd.f32 %v446, %v1964
    %v1966 = vpop.f32.mrb[0].mxu0
    %v1967 = vadd.f32 %v442, %v1966
    %v1968 = vpop.f32.mrb[0].mxu0
    %v1969 = vadd.f32 %v446, %v1968
    %1970 = vmatprep.mubr.bf16.mxu0 %v199
    %1971 = vmatmul.mubr.bf16.gmra.mrb[0].mxu0 %v198
    %v1972 = vpop.f32.mrb[0].mxu0
    %v1973 = vadd.f32 %v442, %v1972
    %v1974 = vpop.f32.mrb[0].mxu0
    %v1975 = vadd.f32 %v446, %v1974
    %v1976 = vpop.f32.mrb[0].mxu0
    %v1977 = vadd.f32 %v442, %v1976
    %v1978 = vpop.f32.mrb[0].mxu0
    %v1979 = vadd.f32 %v446, %v1978
    %1980 = vmatprep.mubr.bf16.mxu0 %v206
    %1981 = vmatmul.mubr.bf16.gmra.mrb[0].mxu0 %v205
    %v1982 = vpop.f32.mrb[0].mxu0
    %v1983 = vadd.f32 %v442, %v1982
    %v1984 = vpop.f32.mrb[0].mxu0
    %v1985 = vadd.f32 %v446, %v1984
    %v1986 = vpop.f32.mrb[0].mxu0
    %v1987 = vadd.f32 %v442, %v1986
    %v1988 = vpop.f32.mrb[0].mxu0
    %v1989 = vadd.f32 %v446, %v1988
    %1990 = vmatprep.mubr.bf16.mxu0 %v213
    %1991 = vmatmul.mubr.bf16.gmra.mrb[0].mxu0 %v212
    %v1992 = vpop.f32.mrb[0].mxu0
    %v1993 = vadd.f32 %v442, %v1992
    %v1994 = vpop.f32.mrb[0].mxu0
    %v1995 = vadd.f32 %v446, %v1994
    %v1996 = vpop.f32.mrb[0].mxu0
    %v1997 = vadd.f32 %v442, %v1996
    %v1998 = vpop.f32.mrb[0].mxu0
    %v1999 = vadd.f32 %v446, %v1998
    %2000 = vmatprep.mubr.bf16.mxu0 %v220
    %2001 = vmatmul.mubr.bf16.gmra.mrb[0].mxu0 %v219
    %v2002 = vpop.f32.mrb[0].mxu0
    %v2003 = vadd.f32 %v442, %v2002
    %v2004 = vpop.f32.mrb[0].mxu0
    %v2005 = vadd.f32 %v446, %v2004
    %v2006 = vpop.f32.mrb[0].mxu0
    %v2007 = vadd.f32 %v442, %v2006
    %v2008 = vpop.f32.mrb[0].mxu0
    %v2009 = vadd.f32 %v446, %v2008
    %2010 = vmatprep.mubr.bf16.mxu0 %v227
    %2011 = vmatmul.mubr.bf16.gmra.mrb[0].mxu0 %v226
    %v2012 = vpop.f32.mrb[0].mxu0
    %v2013 = vadd.f32 %v442, %v2012
    %v2014 = vpop.f32.mrb[0].mxu0
    %v2015 = vadd.f32 %v446, %v2014
    %v2016 = vpop.f32.mrb[0].mxu0
    %v2017 = vadd.f32 %v442, %v2016
    %v2018 = vpop.f32.mrb[0].mxu0
    %v2019 = vadd.f32 %v446, %v2018
    %2020 = vdwg.mxu0
    %2021 = vmatprep.subr.bf16.mxu0 %v1106
    %2022 = vmatpush1.bf16.msra.mxu0 %v1105
    %2023 = vmatprep.subr.bf16.mxu0 %v1110
    %2024 = vmatpush1.bf16.msra.mxu0 %v1109
    %2025 = vmatprep.subr.bf16.mxu0 %v1114
    %2026 = vmatpush1.bf16.msra.mxu0 %v1113
    %2027 = vmatprep.subr.bf16.mxu0 %v1118
    %2028 = vmatpush1.bf16.msra.mxu0 %v1117
    %2029 = vmatprep.subr.bf16.mxu0 %v1122
    %2030 = vmatpush1.bf16.msra.mxu0 %v1121
    %2031 = vmatprep.subr.bf16.mxu0 %v1126
    %2032 = vmatpush1.bf16.msra.mxu0 %v1125
    %2033 = vmatprep.subr.bf16.mxu0 %v1130
    %2034 = vmatpush1.bf16.msra.mxu0 %v1129
    %2035 = vmatprep.subr.bf16.mxu0 %v1134
    %2036 = vmatpush1.bf16.msra.mxu0 %v1133
    %2037 = vmatprep.subr.bf16.mxu0 %v1138
    %2038 = vmatpush1.bf16.msra.mxu0 %v1137
    %2039 = vmatprep.subr.bf16.mxu0 %v1142
    %2040 = vmatpush1.bf16.msra.mxu0 %v1141
    %2041 = vmatprep.subr.bf16.mxu0 %v1146
    %2042 = vmatpush1.bf16.msra.mxu0 %v1145
    %2043 = vmatprep.subr.bf16.mxu0 %v1150
    %2044 = vmatpush1.bf16.msra.mxu0 %v1149
    %2045 = vmatprep.subr.bf16.mxu0 %v1154
    %2046 = vmatpush1.bf16.msra.mxu0 %v1153
    %2047 = vmatprep.subr.bf16.mxu0 %v1158
    %2048 = vmatpush1.bf16.msra.mxu0 %v1157
    %2049 = vmatprep.subr.bf16.mxu0 %v1162
    %2050 = vmatpush1.bf16.msra.mxu0 %v1161
    %2051 = vmatprep.subr.bf16.mxu0 %v1166
    %2052 = vmatpush1.bf16.msra.mxu0 %v1165
    %2053 = vmatprep.mubr.bf16.mxu0 %v180
    %2054 = vmatmul.mubr.bf16.gmra.mrb[0].mxu0 %v179
    %v2055 = vpop.f32.mrb[0].mxu0
    %v2056 = vadd.f32 %v1943, %v2055
    %v2057 = vpop.f32.mrb[0].mxu0
    %v2058 = vadd.f32 %v1945, %v2057
    %v2059 = vpop.f32.mrb[0].mxu0
    %v2060 = vadd.f32 %v1947, %v2059
    %v2061 = vpop.f32.mrb[0].mxu0
    %v2062 = vadd.f32 %v1949, %v2061
    %2063 = vmatprep.mubr.bf16.mxu0 %v187
    %2064 = vmatmul.mubr.bf16.gmra.mrb[0].mxu0 %v186
    %v2065 = vpop.f32.mrb[0].mxu0
    %v2066 = vadd.f32 %v1953, %v2065
    %v2067 = vpop.f32.mrb[0].mxu0
    %v2068 = vadd.f32 %v1955, %v2067
    %v2069 = vpop.f32.mrb[0].mxu0
    %v2070 = vadd.f32 %v1957, %v2069
    %v2071 = vpop.f32.mrb[0].mxu0
    %v2072 = vadd.f32 %v1959, %v2071
    %2073 = vmatprep.mubr.bf16.mxu0 %v194
    %2074 = vmatmul.mubr.bf16.gmra.mrb[0].mxu0 %v193
    %v2075 = vpop.f32.mrb[0].mxu0
    %v2076 = vadd.f32 %v1963, %v2075
    %v2077 = vpop.f32.mrb[0].mxu0
    %v2078 = vadd.f32 %v1965, %v2077
    %v2079 = vpop.f32.mrb[0].mxu0
    %v2080 = vadd.f32 %v1967, %v2079
    %v2081 = vpop.f32.mrb[0].mxu0
    %v2082 = vadd.f32 %v1969, %v2081
    %2083 = vmatprep.mubr.bf16.mxu0 %v201
    %2084 = vmatmul.mubr.bf16.gmra.mrb[0].mxu0 %v200
    %v2085 = vpop.f32.mrb[0].mxu0
    %v2086 = vadd.f32 %v1973, %v2085
    %v2087 = vpop.f32.mrb[0].mxu0
    %v2088 = vadd.f32 %v1975, %v2087
    %v2089 = vpop.f32.mrb[0].mxu0
    %v2090 = vadd.f32 %v1977, %v2089
    %v2091 = vpop.f32.mrb[0].mxu0
    %v2092 = vadd.f32 %v1979, %v2091
    %2093 = vmatprep.mubr.bf16.mxu0 %v208
    %2094 = vmatmul.mubr.bf16.gmra.mrb[0].mxu0 %v207
    %v2095 = vpop.f32.mrb[0].mxu0
    %v2096 = vadd.f32 %v1983, %v2095
    %v2097 = vpop.f32.mrb[0].mxu0
    %v2098 = vadd.f32 %v1985, %v2097
    %v2099 = vpop.f32.mrb[0].mxu0
    %v2100 = vadd.f32 %v1987, %v2099
    %v2101 = vpop.f32.mrb[0].mxu0
    %v2102 = vadd.f32 %v1989, %v2101
    %2103 = vmatprep.mubr.bf16.mxu0 %v215
    %2104 = vmatmul.mubr.bf16.gmra.mrb[0].mxu0 %v214
    %v2105 = vpop.f32.mrb[0].mxu0
    %v2106 = vadd.f32 %v1993, %v2105
    %v2107 = vpop.f32.mrb[0].mxu0
    %v2108 = vadd.f32 %v1995, %v2107
    %v2109 = vpop.f32.mrb[0].mxu0
    %v2110 = vadd.f32 %v1997, %v2109
    %v2111 = vpop.f32.mrb[0].mxu0
    %v2112 = vadd.f32 %v1999, %v2111
    %2113 = vmatprep.mubr.bf16.mxu0 %v222
    %2114 = vmatmul.mubr.bf16.gmra.mrb[0].mxu0 %v221
    %v2115 = vpop.f32.mrb[0].mxu0
    %v2116 = vadd.f32 %v2003, %v2115
    %v2117 = vpop.f32.mrb[0].mxu0
    %v2118 = vadd.f32 %v2005, %v2117
    %v2119 = vpop.f32.mrb[0].mxu0
    %v2120 = vadd.f32 %v2007, %v2119
    %v2121 = vpop.f32.mrb[0].mxu0
    %v2122 = vadd.f32 %v2009, %v2121
    %2123 = vmatprep.mubr.bf16.mxu0 %v229
    %2124 = vmatmul.mubr.bf16.gmra.mrb[0].mxu0 %v228
    %v2125 = vpop.f32.mrb[0].mxu0
    %v2126 = vadd.f32 %v2013, %v2125
    %v2127 = vpop.f32.mrb[0].mxu0
    %v2128 = vadd.f32 %v2015, %v2127
    %v2129 = vpop.f32.mrb[0].mxu0
    %v2130 = vadd.f32 %v2017, %v2129
    %v2131 = vpop.f32.mrb[0].mxu0
    %v2132 = vadd.f32 %v2019, %v2131
    %2133 = vdwg.mxu0
    %2134 = vmatprep.subr.bf16.mxu0 %v1170
    %2135 = vmatpush1.bf16.msra.mxu0 %v1169
    %2136 = vmatprep.subr.bf16.mxu0 %v1174
    %2137 = vmatpush1.bf16.msra.mxu0 %v1173
    %2138 = vmatprep.subr.bf16.mxu0 %v1178
    %2139 = vmatpush1.bf16.msra.mxu0 %v1177
    %2140 = vmatprep.subr.bf16.mxu0 %v1182
    %2141 = vmatpush1.bf16.msra.mxu0 %v1181
    %2142 = vmatprep.subr.bf16.mxu0 %v1186
    %2143 = vmatpush1.bf16.msra.mxu0 %v1185
    %2144 = vmatprep.subr.bf16.mxu0 %v1190
    %2145 = vmatpush1.bf16.msra.mxu0 %v1189
    %2146 = vmatprep.subr.bf16.mxu0 %v1194
    %2147 = vmatpush1.bf16.msra.mxu0 %v1193
    %2148 = vmatprep.subr.bf16.mxu0 %v1198
    %2149 = vmatpush1.bf16.msra.mxu0 %v1197
    %2150 = vmatprep.subr.bf16.mxu0 %v1202
    %2151 = vmatpush1.bf16.msra.mxu0 %v1201
    %2152 = vmatprep.subr.bf16.mxu0 %v1206
    %2153 = vmatpush1.bf16.msra.mxu0 %v1205
    %2154 = vmatprep.subr.bf16.mxu0 %v1210
    %2155 = vmatpush1.bf16.msra.mxu0 %v1209
    %2156 = vmatprep.subr.bf16.mxu0 %v1214
    %2157 = vmatpush1.bf16.msra.mxu0 %v1213
    %2158 = vmatprep.subr.bf16.mxu0 %v1218
    %2159 = vmatpush1.bf16.msra.mxu0 %v1217
    %2160 = vmatprep.subr.bf16.mxu0 %v1222
    %2161 = vmatpush1.bf16.msra.mxu0 %v1221
    %2162 = vmatprep.subr.bf16.mxu0 %v1226
    %2163 = vmatpush1.bf16.msra.mxu0 %v1225
    %2164 = vmatprep.subr.bf16.mxu0 %v1230
    %2165 = vmatpush1.bf16.msra.mxu0 %v1229
    %2166 = vmatprep.mubr.bf16.mxu0 %v182
    %2167 = vmatmul.mubr.bf16.gmra.mrb[0].mxu0 %v181
    %v2168 = vpop.f32.mrb[0].mxu0
    %v2169 = vadd.f32 %v2056, %v2168
    %v2170 = vpop.f32.mrb[0].mxu0
    %v2171 = vadd.f32 %v2058, %v2170
    %v2172 = vpop.f32.mrb[0].mxu0
    %v2173 = vadd.f32 %v2060, %v2172
    %v2174 = vpop.f32.mrb[0].mxu0
    %v2175 = vadd.f32 %v2062, %v2174
    %2176 = vmatprep.mubr.bf16.mxu0 %v189
    %2177 = vmatmul.mubr.bf16.gmra.mrb[0].mxu0 %v188
    %v2178 = vpop.f32.mrb[0].mxu0
    %v2179 = vadd.f32 %v2066, %v2178
    %v2180 = vpop.f32.mrb[0].mxu0
    %v2181 = vadd.f32 %v2068, %v2180
    %v2182 = vpop.f32.mrb[0].mxu0
    %v2183 = vadd.f32 %v2070, %v2182
    %v2184 = vpop.f32.mrb[0].mxu0
    %v2185 = vadd.f32 %v2072, %v2184
    %2186 = vmatprep.mubr.bf16.mxu0 %v196
    %2187 = vmatmul.mubr.bf16.gmra.mrb[0].mxu0 %v195
    %v2188 = vpop.f32.mrb[0].mxu0
    %v2189 = vadd.f32 %v2076, %v2188
    %v2190 = vpop.f32.mrb[0].mxu0
    %v2191 = vadd.f32 %v2078, %v2190
    %v2192 = vpop.f32.mrb[0].mxu0
    %v2193 = vadd.f32 %v2080, %v2192
    %v2194 = vpop.f32.mrb[0].mxu0
    %v2195 = vadd.f32 %v2082, %v2194
    %2196 = vmatprep.mubr.bf16.mxu0 %v203
    %2197 = vmatmul.mubr.bf16.gmra.mrb[0].mxu0 %v202
    %v2198 = vpop.f32.mrb[0].mxu0
    %v2199 = vadd.f32 %v2086, %v2198
    %v2200 = vpop.f32.mrb[0].mxu0
    %v2201 = vadd.f32 %v2088, %v2200
    %v2202 = vpop.f32.mrb[0].mxu0
    %v2203 = vadd.f32 %v2090, %v2202
    %v2204 = vpop.f32.mrb[0].mxu0
    %v2205 = vadd.f32 %v2092, %v2204
    %2206 = vmatprep.mubr.bf16.mxu0 %v210
    %2207 = vmatmul.mubr.bf16.gmra.mrb[0].mxu0 %v209
    %v2208 = vpop.f32.mrb[0].mxu0
    %v2209 = vadd.f32 %v2096, %v2208
    %v2210 = vpop.f32.mrb[0].mxu0
    %v2211 = vadd.f32 %v2098, %v2210
    %v2212 = vpop.f32.mrb[0].mxu0
    %v2213 = vadd.f32 %v2100, %v2212
    %v2214 = vpop.f32.mrb[0].mxu0
    %v2215 = vadd.f32 %v2102, %v2214
    %2216 = vmatprep.mubr.bf16.mxu0 %v217
    %2217 = vmatmul.mubr.bf16.gmra.mrb[0].mxu0 %v216
    %v2218 = vpop.f32.mrb[0].mxu0
    %v2219 = vadd.f32 %v2106, %v2218
    %v2220 = vpop.f32.mrb[0].mxu0
    %v2221 = vadd.f32 %v2108, %v2220
    %v2222 = vpop.f32.mrb[0].mxu0
    %v2223 = vadd.f32 %v2110, %v2222
    %v2224 = vpop.f32.mrb[0].mxu0
    %v2225 = vadd.f32 %v2112, %v2224
    %2226 = vmatprep.mubr.bf16.mxu0 %v224
    %2227 = vmatmul.mubr.bf16.gmra.mrb[0].mxu0 %v223
    %v2228 = vpop.f32.mrb[0].mxu0
    %v2229 = vadd.f32 %v2116, %v2228
    %v2230 = vpop.f32.mrb[0].mxu0
    %v2231 = vadd.f32 %v2118, %v2230
    %v2232 = vpop.f32.mrb[0].mxu0
    %v2233 = vadd.f32 %v2120, %v2232
    %v2234 = vpop.f32.mrb[0].mxu0
    %v2235 = vadd.f32 %v2122, %v2234
    %2236 = vmatprep.mubr.bf16.mxu0 %v231
    %2237 = vmatmul.mubr.bf16.gmra.mrb[0].mxu0 %v230
    %v2238 = vpop.f32.mrb[0].mxu0
    %v2239 = vadd.f32 %v2126, %v2238
    %v2240 = vpop.f32.mrb[0].mxu0
    %v2241 = vadd.f32 %v2128, %v2240
    %v2242 = vpop.f32.mrb[0].mxu0
    %v2243 = vadd.f32 %v2130, %v2242
    %v2244 = vpop.f32.mrb[0].mxu0
    %v2245 = vadd.f32 %v2132, %v2244
    %2246 = vdwg.mxu0
    %2247 = vmatprep.subr.bf16.mxu0 %v1234
    %2248 = vmatpush1.bf16.msra.mxu0 %v1233
    %2249 = vmatprep.subr.bf16.mxu0 0
    %2250 = vmatpush1.bf16.msra.mxu0 0
    %2251 = vmatprep.subr.bf16.mxu0 0
    %2252 = vmatpush1.bf16.msra.mxu0 0
    %2253 = vmatprep.subr.bf16.mxu0 0
    %2254 = vmatpush1.bf16.msra.mxu0 0
    %2255 = vmatprep.subr.bf16.mxu0 0
    %2256 = vmatpush1.bf16.msra.mxu0 0
    %2257 = vmatprep.subr.bf16.mxu0 0
    %2258 = vmatpush1.bf16.msra.mxu0 0
    %2259 = vmatprep.subr.bf16.mxu0 0
    %2260 = vmatpush1.bf16.msra.mxu0 0
    %2261 = vmatprep.subr.bf16.mxu0 0
    %2262 = vmatpush1.bf16.msra.mxu0 0
    %2263 = vmatprep.subr.bf16.mxu0 0
    %2264 = vmatpush1.bf16.msra.mxu0 0
    %2265 = vmatprep.subr.bf16.mxu0 0
    %2266 = vmatpush1.bf16.msra.mxu0 0
    %2267 = vmatprep.subr.bf16.mxu0 0
    %2268 = vmatpush1.bf16.msra.mxu0 0
    %2269 = vmatprep.subr.bf16.mxu0 0
    %2270 = vmatpush1.bf16.msra.mxu0 0
    %2271 = vmatprep.subr.bf16.mxu0 0
    %2272 = vmatpush1.bf16.msra.mxu0 0
    %2273 = vmatprep.subr.bf16.mxu0 0
    %2274 = vmatpush1.bf16.msra.mxu0 0
    %2275 = vmatprep.subr.bf16.mxu0 0
    %2276 = vmatpush1.bf16.msra.mxu0 0
    %2277 = vmatprep.subr.bf16.mxu0 0
    %2278 = vmatpush1.bf16.msra.mxu0 0
    %2279 = vmatprep.mubr.bf16.mxu0 0
    %2280 = vmatmul.mubr.bf16.gmra.mrb[0].mxu0 %v1433
    %v2281 = vpop.f32.mrb[0].mxu0
    %v2282 = vadd.f32 %v2169, %v2281
    %v2283 = vpop.f32.mrb[0].mxu0
    %v2284 = vadd.f32 %v2171, %v2283
    %v2285 = vpop.f32.mrb[0].mxu0
    %v2286 = vadd.f32 %v2173, %v2285
    %v2287 = vpop.f32.mrb[0].mxu0
    %v2288 = vadd.f32 %v2175, %v2287
    %2289 = vmatprep.mubr.bf16.mxu0 0
    %2290 = vmatmul.mubr.bf16.gmra.mrb[0].mxu0 %v1436
    %v2291 = vpop.f32.mrb[0].mxu0
    %v2292 = vadd.f32 %v2179, %v2291
    %v2293 = vpop.f32.mrb[0].mxu0
    %v2294 = vadd.f32 %v2181, %v2293
    %v2295 = vpop.f32.mrb[0].mxu0
    %v2296 = vadd.f32 %v2183, %v2295
    %v2297 = vpop.f32.mrb[0].mxu0
    %v2298 = vadd.f32 %v2185, %v2297
    %2299 = vmatprep.mubr.bf16.mxu0 0
    %2300 = vmatmul.mubr.bf16.gmra.mrb[0].mxu0 %v1439
    %v2301 = vpop.f32.mrb[0].mxu0
    %v2302 = vadd.f32 %v2189, %v2301
    %v2303 = vpop.f32.mrb[0].mxu0
    %v2304 = vadd.f32 %v2191, %v2303
    %v2305 = vpop.f32.mrb[0].mxu0
    %v2306 = vadd.f32 %v2193, %v2305
    %v2307 = vpop.f32.mrb[0].mxu0
    %v2308 = vadd.f32 %v2195, %v2307
    %2309 = vmatprep.mubr.bf16.mxu0 0
    %2310 = vmatmul.mubr.bf16.gmra.mrb[0].mxu0 %v1442
    %v2311 = vpop.f32.mrb[0].mxu0
    %v2312 = vadd.f32 %v2199, %v2311
    %v2313 = vpop.f32.mrb[0].mxu0
    %v2314 = vadd.f32 %v2201, %v2313
    %v2315 = vpop.f32.mrb[0].mxu0
    %v2316 = vadd.f32 %v2203, %v2315
    %v2317 = vpop.f32.mrb[0].mxu0
    %v2318 = vadd.f32 %v2205, %v2317
    %2319 = vmatprep.mubr.bf16.mxu0 0
    %2320 = vmatmul.mubr.bf16.gmra.mrb[0].mxu0 %v1445
    %v2321 = vpop.f32.mrb[0].mxu0
    %v2322 = vadd.f32 %v2209, %v2321
    %v2323 = vpop.f32.mrb[0].mxu0
    %v2324 = vadd.f32 %v2211, %v2323
    %v2325 = vpop.f32.mrb[0].mxu0
    %v2326 = vadd.f32 %v2213, %v2325
    %v2327 = vpop.f32.mrb[0].mxu0
    %v2328 = vadd.f32 %v2215, %v2327
    %2329 = vmatprep.mubr.bf16.mxu0 0
    %2330 = vmatmul.mubr.bf16.gmra.mrb[0].mxu0 %v1448
    %v2331 = vpop.f32.mrb[0].mxu0
    %v2332 = vadd.f32 %v2219, %v2331
    %v2333 = vpop.f32.mrb[0].mxu0
    %v2334 = vadd.f32 %v2221, %v2333
    %v2335 = vpop.f32.mrb[0].mxu0
    %v2336 = vadd.f32 %v2223, %v2335
    %v2337 = vpop.f32.mrb[0].mxu0
    %v2338 = vadd.f32 %v2225, %v2337
    %2339 = vmatprep.mubr.bf16.mxu0 0
    %2340 = vmatmul.mubr.bf16.gmra.mrb[0].mxu0 %v1451
    %v2341 = vpop.f32.mrb[0].mxu0
    %v2342 = vadd.f32 %v2229, %v2341
    %v2343 = vpop.f32.mrb[0].mxu0
    %v2344 = vadd.f32 %v2231, %v2343
    %v2345 = vpop.f32.mrb[0].mxu0
    %v2346 = vadd.f32 %v2233, %v2345
    %v2347 = vpop.f32.mrb[0].mxu0
    %v2348 = vadd.f32 %v2235, %v2347
    %2349 = vmatprep.mubr.bf16.mxu0 0
    %2350 = vmatmul.mubr.bf16.gmra.mrb[0].mxu0 %v1454
    %v2351 = vpop.f32.mrb[0].mxu0
    %v2352 = vadd.f32 %v2239, %v2351
    %v2353 = vpop.f32.mrb[0].mxu0
    %v2354 = vadd.f32 %v2241, %v2353
    %v2355 = vpop.f32.mrb[0].mxu0
    %v2356 = vadd.f32 %v2243, %v2355
    %v2357 = vpop.f32.mrb[0].mxu0
    %v2358 = vadd.f32 %v2245, %v2357
    %2359 = vdwg.mxu0
    %v2360 = vmax.f32 %v1830, 0.0
    %v2361 = vmax.f32 %v1832, 0.0
    %v2362 = vmax.f32 %v2282, 0.0
    %v2363 = vmax.f32 %v2284, 0.0
    %v2364 = vmax.f32 %v1834, 0.0
    %v2365 = vmax.f32 %v1836, 0.0
    %v2366 = vmax.f32 %v2286, 0.0
    %v2367 = vmax.f32 %v2288, 0.0
    %v2368 = vmax.f32 %v1840, 0.0
    %v2369 = vmax.f32 %v1842, 0.0
    %v2370 = vmax.f32 %v2292, 0.0
    %v2371 = vmax.f32 %v2294, 0.0
    %v2372 = vmax.f32 %v1844, 0.0
    %v2373 = vmax.f32 %v1846, 0.0
    %v2374 = vmax.f32 %v2296, 0.0
    %v2375 = vmax.f32 %v2298, 0.0
    %v2376 = vmax.f32 %v1850, 0.0
    %v2377 = vmax.f32 %v1852, 0.0
    %v2378 = vmax.f32 %v2302, 0.0
    %v2379 = vmax.f32 %v2304, 0.0
    %v2380 = vmax.f32 %v1854, 0.0
    %v2381 = vmax.f32 %v1856, 0.0
    %v2382 = vmax.f32 %v2306, 0.0
    %v2383 = vmax.f32 %v2308, 0.0
    %v2384 = vmax.f32 %v1860, 0.0
    %v2385 = vmax.f32 %v1862, 0.0
    %v2386 = vmax.f32 %v2312, 0.0
    %v2387 = vmax.f32 %v2314, 0.0
    %v2388 = vmax.f32 %v1864, 0.0
    %v2389 = vmax.f32 %v1866, 0.0
    %v2390 = vmax.f32 %v2316, 0.0
    %v2391 = vmax.f32 %v2318, 0.0
    %v2392 = vmax.f32 %v1870, 0.0
    %v2393 = vmax.f32 %v1872, 0.0
    %v2394 = vmax.f32 %v2322, 0.0
    %v2395 = vmax.f32 %v2324, 0.0
    %v2396 = vmax.f32 %v1874, 0.0
    %v2397 = vmax.f32 %v1876, 0.0
    %v2398 = vmax.f32 %v2326, 0.0
    %v2399 = vmax.f32 %v2328, 0.0
    %v2400 = vmax.f32 %v1880, 0.0
    %v2401 = vmax.f32 %v1882, 0.0
    %v2402 = vmax.f32 %v2332, 0.0
    %v2403 = vmax.f32 %v2334, 0.0
    %v2404 = vmax.f32 %v1884, 0.0
    %v2405 = vmax.f32 %v1886, 0.0
    %v2406 = vmax.f32 %v2336, 0.0
    %v2407 = vmax.f32 %v2338, 0.0
    %v2408 = vmax.f32 %v1890, 0.0
    %v2409 = vmax.f32 %v1892, 0.0
    %v2410 = vmax.f32 %v2342, 0.0
    %v2411 = vmax.f32 %v2344, 0.0
    %v2412 = vmax.f32 %v1894, 0.0
    %v2413 = vmax.f32 %v1896, 0.0
    %v2414 = vmax.f32 %v2346, 0.0
    %v2415 = vmax.f32 %v2348, 0.0
    %v2416 = vmax.f32 %v1900, 0.0
    %v2417 = vmax.f32 %v1902, 0.0
    %v2418 = vmax.f32 %v2352, 0.0
    %v2419 = vmax.f32 %v2354, 0.0
    %v2420 = vmax.f32 %v1904, 0.0
    %v2421 = vmax.f32 %v1906, 0.0
    %v2422 = vmax.f32 %v2356, 0.0
    %v2423 = vmax.f32 %v2358, 0.0
    %v2424 = vpack.c.bf16 %v2364, %v2360
    %v2425 = vpack.c.bf16 %v2365, %v2361
    %v2426 = vpack.c.bf16 %v2366, %v2362
    %v2427 = vpack.c.bf16 %v2367, %v2363
    %v2428 = vpack.c.bf16 %v2372, %v2368
    %v2429 = vpack.c.bf16 %v2373, %v2369
    %v2430 = vpack.c.bf16 %v2374, %v2370
    %v2431 = vpack.c.bf16 %v2375, %v2371
    %v2432 = vpack.c.bf16 %v2380, %v2376
    %v2433 = vpack.c.bf16 %v2381, %v2377
    %v2434 = vpack.c.bf16 %v2382, %v2378
    %v2435 = vpack.c.bf16 %v2383, %v2379
    %v2436 = vpack.c.bf16 %v2388, %v2384
    %v2437 = vpack.c.bf16 %v2389, %v2385
    %v2438 = vpack.c.bf16 %v2390, %v2386
    %v2439 = vpack.c.bf16 %v2391, %v2387
    %v2440 = vpack.c.bf16 %v2396, %v2392
    %v2441 = vpack.c.bf16 %v2397, %v2393
    %v2442 = vpack.c.bf16 %v2398, %v2394
    %v2443 = vpack.c.bf16 %v2399, %v2395
    %v2444 = vpack.c.bf16 %v2404, %v2400
    %v2445 = vpack.c.bf16 %v2405, %v2401
    %v2446 = vpack.c.bf16 %v2406, %v2402
    %v2447 = vpack.c.bf16 %v2407, %v2403
    %v2448 = vpack.c.bf16 %v2412, %v2408
    %v2449 = vpack.c.bf16 %v2413, %v2409
    %v2450 = vpack.c.bf16 %v2414, %v2410
    %v2451 = vpack.c.bf16 %v2415, %v2411
    %v2452 = vpack.c.bf16 %v2420, %v2416
    %v2453 = vpack.c.bf16 %v2421, %v2417
    %v2454 = vpack.c.bf16 %v2422, %v2418
    %v2455 = vpack.c.bf16 %v2423, %v2419
    %v2456 = vld [vmem:[#allocation5] sm:$0xff]
    %v2457 = vld [vmem:[#allocation5 + $0x8] sm:$0xff]
    %v2458 = vld [vmem:[#allocation5 + $0x10] sm:$0xff]
    %v2459 = vld [vmem:[#allocation5 + $0x18] sm:$0xff]
    %v2460 = vld [vmem:[#allocation5 + $0x20] sm:$0xff]
    %v2461 = vld [vmem:[#allocation5 + $0x28] sm:$0xff]
    %v2462 = vld [vmem:[#allocation5 + $0x30] sm:$0xff]
    %v2463 = vld [vmem:[#allocation5 + $0x38] sm:$0xff]
    %v2464 = vld [vmem:[#allocation5 + $0x40] sm:$0xff]
    %v2465 = vld [vmem:[#allocation5 + $0x48] sm:$0xff]
    %v2466 = vld [vmem:[#allocation5 + $0x50] sm:$0xff]
    %v2467 = vld [vmem:[#allocation5 + $0x58] sm:$0xff]
    %v2468 = vld [vmem:[#allocation5 + $0x60] sm:$0xff]
    %v2469 = vld [vmem:[#allocation5 + $0x68] sm:$0xff]
    %v2470 = vld [vmem:[#allocation5 + $0x70] sm:$0xff]
    %v2471 = vld [vmem:[#allocation5 + $0x78] sm:$0xff]
    %v2472 = vld [vmem:[#allocation5 + $0x80] sm:$0xff]
    %v2473 = vld [vmem:[#allocation5 + $0x88] sm:$0xff]
    %v2474 = vld [vmem:[#allocation5 + $0x90] sm:$0xff]
    %v2475 = vld [vmem:[#allocation5 + $0x98] sm:$0xff]
    %v2476 = vld [vmem:[#allocation5 + $0xa0] sm:$0xff]
    %v2477 = vld [vmem:[#allocation5 + $0xa8] sm:$0xff]
    %v2478 = vld [vmem:[#allocation5 + $0xb0] sm:$0xff]
    %v2479 = vld [vmem:[#allocation5 + $0xb8] sm:$0xff]
    %v2480 = vld [vmem:[#allocation5 + $0xc0] sm:$0xff]
    %v2481 = vld [vmem:[#allocation5 + $0xc8] sm:$0xff]
    %v2482 = vld [vmem:[#allocation5 + $0xd0] sm:$0xff]
    %v2483 = vld [vmem:[#allocation5 + $0xd8] sm:$0xff]
    %v2484 = vld [vmem:[#allocation5 + $0xe0] sm:$0xff]
    %v2485 = vld [vmem:[#allocation5 + $0xe8] sm:$0xff]
    %v2486 = vld [vmem:[#allocation5 + $0xf0] sm:$0xff]
    %v2487 = vld [vmem:[#allocation5 + $0xf8] sm:$0xff]
    %v2488 = vld [vmem:[#allocation5 + $0x100] sm:$0xff]
    %v2489 = vld [vmem:[#allocation5 + $0x108] sm:$0xff]
    %v2490 = vld [vmem:[#allocation5 + $0x110] sm:$0xff]
    %v2491 = vld [vmem:[#allocation5 + $0x118] sm:$0xff]
    %v2492 = vld [vmem:[#allocation5 + $0x120] sm:$0xff]
    %v2493 = vld [vmem:[#allocation5 + $0x128] sm:$0xff]
    %v2494 = vld [vmem:[#allocation5 + $0x130] sm:$0xff]
    %v2495 = vld [vmem:[#allocation5 + $0x138] sm:$0xff]
    %v2496 = vld [vmem:[#allocation5 + $0x140] sm:$0xff]
    %v2497 = vld [vmem:[#allocation5 + $0x148] sm:$0xff]
    %v2498 = vld [vmem:[#allocation5 + $0x150] sm:$0xff]
    %v2499 = vld [vmem:[#allocation5 + $0x158] sm:$0xff]
    %v2500 = vld [vmem:[#allocation5 + $0x160] sm:$0xff]
    %v2501 = vld [vmem:[#allocation5 + $0x168] sm:$0xff]
    %v2502 = vld [vmem:[#allocation5 + $0x170] sm:$0xff]
    %v2503 = vld [vmem:[#allocation5 + $0x178] sm:$0xff]
    %v2504 = vld [vmem:[#allocation5 + $0x180] sm:$0xff]
    %v2505 = vld [vmem:[#allocation5 + $0x188] sm:$0xff]
    %v2506 = vld [vmem:[#allocation5 + $0x190] sm:$0xff]
    %v2507 = vld [vmem:[#allocation5 + $0x198] sm:$0xff]
    %v2508 = vld [vmem:[#allocation5 + $0x1a0] sm:$0xff]
    %v2509 = vld [vmem:[#allocation5 + $0x1a8] sm:$0xff]
    %v2510 = vld [vmem:[#allocation5 + $0x1b0] sm:$0xff]
    %v2511 = vld [vmem:[#allocation5 + $0x1b8] sm:$0xff]
    %v2512 = vld [vmem:[#allocation5 + $0x1c0] sm:$0xff]
    %v2513 = vld [vmem:[#allocation5 + $0x1c8] sm:$0xff]
    %v2514 = vld [vmem:[#allocation5 + $0x1d0] sm:$0xff]
    %v2515 = vld [vmem:[#allocation5 + $0x1d8] sm:$0xff]
    %v2516 = vld [vmem:[#allocation5 + $0x1e0] sm:$0xff]
    %v2517 = vld [vmem:[#allocation5 + $0x1e8] sm:$0xff]
    %v2518 = vld [vmem:[#allocation5 + $0x1f0] sm:$0xff]
    %v2519 = vld [vmem:[#allocation5 + $0x1f8] sm:$0xff]
    %v2520 = vld [vmem:[%s4] sm:$0x3]
    %v2522 = vlaneseq
    %v2523 = vshrl.u32 %v2522, 7
    %v2524 = vsub.s32 0, %v2523
    %v2525 = vrot.slane %v2520, %v2524
    %v2526 = vlaneseq
    %v2527 = vshrl.u32 %v2526, 7
    %v2528 = vsub.s32 1, %v2527
    %v2529 = vrot.slane %v2520, %v2528
    %v2596 = vunpack.c.l.b16 %v2456
    %v2597 = vunpack.c.h.b16 %v2456
    %v2598 = vunpack.c.l.b16 %v2457
    %v2599 = vunpack.c.h.b16 %v2457
    %v2600 = vunpack.c.l.b16 %v2458
    %v2601 = vunpack.c.h.b16 %v2458
    %v2602 = vunpack.c.l.b16 %v2459
    %v2603 = vunpack.c.h.b16 %v2459
    %v2604 = vunpack.c.l.b16 %v2460
    %v2605 = vunpack.c.h.b16 %v2460
    %v2606 = vunpack.c.l.b16 %v2461
    %v2607 = vunpack.c.h.b16 %v2461
    %v2608 = vunpack.c.l.b16 %v2462
    %v2609 = vunpack.c.h.b16 %v2462
    %v2610 = vunpack.c.l.b16 %v2463
    %v2611 = vunpack.c.h.b16 %v2463
    %v2612 = vunpack.c.l.b16 %v2464
    %v2613 = vunpack.c.h.b16 %v2464
    %v2614 = vunpack.c.l.b16 %v2465
    %v2615 = vunpack.c.h.b16 %v2465
    %v2616 = vunpack.c.l.b16 %v2466
    %v2617 = vunpack.c.h.b16 %v2466
    %v2618 = vunpack.c.l.b16 %v2467
    %v2619 = vunpack.c.h.b16 %v2467
    %v2620 = vunpack.c.l.b16 %v2468
    %v2621 = vunpack.c.h.b16 %v2468
    %v2622 = vunpack.c.l.b16 %v2469
    %v2623 = vunpack.c.h.b16 %v2469
    %v2624 = vunpack.c.l.b16 %v2470
    %v2625 = vunpack.c.h.b16 %v2470
    %v2626 = vunpack.c.l.b16 %v2471
    %v2627 = vunpack.c.h.b16 %v2471
    %v2628 = vunpack.c.l.b16 %v2472
    %v2629 = vunpack.c.h.b16 %v2472
    %v2630 = vunpack.c.l.b16 %v2473
    %v2631 = vunpack.c.h.b16 %v2473
    %v2632 = vunpack.c.l.b16 %v2474
    %v2633 = vunpack.c.h.b16 %v2474
    %v2634 = vunpack.c.l.b16 %v2475
    %v2635 = vunpack.c.h.b16 %v2475
    %v2636 = vunpack.c.l.b16 %v2476
    %v2637 = vunpack.c.h.b16 %v2476
    %v2638 = vunpack.c.l.b16 %v2477
    %v2639 = vunpack.c.h.b16 %v2477
    %v2640 = vunpack.c.l.b16 %v2478
    %v2641 = vunpack.c.h.b16 %v2478
    %v2642 = vunpack.c.l.b16 %v2479
    %v2643 = vunpack.c.h.b16 %v2479
    %v2644 = vunpack.c.l.b16 %v2480
    %v2645 = vunpack.c.h.b16 %v2480
    %v2646 = vunpack.c.l.b16 %v2481
    %v2647 = vunpack.c.h.b16 %v2481
    %v2648 = vunpack.c.l.b16 %v2482
    %v2649 = vunpack.c.h.b16 %v2482
    %v2650 = vunpack.c.l.b16 %v2483
    %v2651 = vunpack.c.h.b16 %v2483
    %v2652 = vunpack.c.l.b16 %v2484
    %v2653 = vunpack.c.h.b16 %v2484
    %v2654 = vunpack.c.l.b16 %v2485
    %v2655 = vunpack.c.h.b16 %v2485
    %v2656 = vunpack.c.l.b16 %v2486
    %v2657 = vunpack.c.h.b16 %v2486
    %v2658 = vunpack.c.l.b16 %v2487
    %v2659 = vunpack.c.h.b16 %v2487
    %v2660 = vunpack.c.l.b16 %v2488
    %v2661 = vunpack.c.h.b16 %v2488
    %v2662 = vunpack.c.l.b16 %v2489
    %v2663 = vunpack.c.h.b16 %v2489
    %v2664 = vunpack.c.l.b16 %v2490
    %v2665 = vunpack.c.h.b16 %v2490
    %v2666 = vunpack.c.l.b16 %v2491
    %v2667 = vunpack.c.h.b16 %v2491
    %v2668 = vunpack.c.l.b16 %v2492
    %v2669 = vunpack.c.h.b16 %v2492
    %v2670 = vunpack.c.l.b16 %v2493
    %v2671 = vunpack.c.h.b16 %v2493
    %v2672 = vunpack.c.l.b16 %v2494
    %v2673 = vunpack.c.h.b16 %v2494
    %v2674 = vunpack.c.l.b16 %v2495
    %v2675 = vunpack.c.h.b16 %v2495
    %v2676 = vunpack.c.l.b16 %v2496
    %v2677 = vunpack.c.h.b16 %v2496
    %v2678 = vunpack.c.l.b16 %v2497
    %v2679 = vunpack.c.h.b16 %v2497
    %v2680 = vunpack.c.l.b16 %v2498
    %v2681 = vunpack.c.h.b16 %v2498
    %v2682 = vunpack.c.l.b16 %v2499
    %v2683 = vunpack.c.h.b16 %v2499
    %v2684 = vunpack.c.l.b16 %v2500
    %v2685 = vunpack.c.h.b16 %v2500
    %v2686 = vunpack.c.l.b16 %v2501
    %v2687 = vunpack.c.h.b16 %v2501
    %v2688 = vunpack.c.l.b16 %v2502
    %v2689 = vunpack.c.h.b16 %v2502
    %v2690 = vunpack.c.l.b16 %v2503
    %v2691 = vunpack.c.h.b16 %v2503
    %v2692 = vunpack.c.l.b16 %v2504
    %v2693 = vunpack.c.h.b16 %v2504
    %v2694 = vunpack.c.l.b16 %v2505
    %v2695 = vunpack.c.h.b16 %v2505
    %v2696 = vunpack.c.l.b16 %v2506
    %v2697 = vunpack.c.h.b16 %v2506
    %v2698 = vunpack.c.l.b16 %v2507
    %v2699 = vunpack.c.h.b16 %v2507
    %v2700 = vunpack.c.l.b16 %v2508
    %v2701 = vunpack.c.h.b16 %v2508
    %v2702 = vunpack.c.l.b16 %v2509
    %v2703 = vunpack.c.h.b16 %v2509
    %v2704 = vunpack.c.l.b16 %v2510
    %v2705 = vunpack.c.h.b16 %v2510
    %v2706 = vunpack.c.l.b16 %v2511
    %v2707 = vunpack.c.h.b16 %v2511
    %v2708 = vunpack.c.l.b16 %v2512
    %v2709 = vunpack.c.h.b16 %v2512
    %v2710 = vunpack.c.l.b16 %v2513
    %v2711 = vunpack.c.h.b16 %v2513
    %v2712 = vunpack.c.l.b16 %v2514
    %v2713 = vunpack.c.h.b16 %v2514
    %v2714 = vunpack.c.l.b16 %v2515
    %v2715 = vunpack.c.h.b16 %v2515
    %v2716 = vunpack.c.l.b16 %v2516
    %v2717 = vunpack.c.h.b16 %v2516
    %v2718 = vunpack.c.l.b16 %v2517
    %v2719 = vunpack.c.h.b16 %v2517
    %v2720 = vunpack.c.l.b16 %v2518
    %v2721 = vunpack.c.h.b16 %v2518
    %v2722 = vunpack.c.l.b16 %v2519
    %v2723 = vunpack.c.h.b16 %v2519
    %v2724 = vpack.c.b16 %v2598, %v2596
    %v2725 = vpack.c.b16 %v2599, %v2597
    %v2726 = vpack.c.b16 %v2602, %v2600
    %v2727 = vpack.c.b16 %v2603, %v2601
    %v2728 = vpack.c.b16 %v2606, %v2604
    %v2729 = vpack.c.b16 %v2607, %v2605
    %v2730 = vpack.c.b16 %v2610, %v2608
    %v2731 = vpack.c.b16 %v2611, %v2609
    %v2732 = vpack.c.b16 %v2614, %v2612
    %v2733 = vpack.c.b16 %v2615, %v2613
    %v2734 = vpack.c.b16 %v2618, %v2616
    %v2735 = vpack.c.b16 %v2619, %v2617
    %v2736 = vpack.c.b16 %v2622, %v2620
    %v2737 = vpack.c.b16 %v2623, %v2621
    %v2738 = vpack.c.b16 %v2626, %v2624
    %v2739 = vpack.c.b16 %v2627, %v2625
    %v2740 = vpack.c.b16 %v2630, %v2628
    %v2741 = vpack.c.b16 %v2631, %v2629
    %v2742 = vpack.c.b16 %v2634, %v2632
    %v2743 = vpack.c.b16 %v2635, %v2633
    %v2744 = vpack.c.b16 %v2638, %v2636
    %v2745 = vpack.c.b16 %v2639, %v2637
    %v2746 = vpack.c.b16 %v2642, %v2640
    %v2747 = vpack.c.b16 %v2643, %v2641
    %v2748 = vpack.c.b16 %v2646, %v2644
    %v2749 = vpack.c.b16 %v2647, %v2645
    %v2750 = vpack.c.b16 %v2650, %v2648
    %v2751 = vpack.c.b16 %v2651, %v2649
    %v2752 = vpack.c.b16 %v2654, %v2652
    %v2753 = vpack.c.b16 %v2655, %v2653
    %v2754 = vpack.c.b16 %v2658, %v2656
    %v2755 = vpack.c.b16 %v2659, %v2657
    %v2756 = vpack.c.b16 %v2662, %v2660
    %v2757 = vpack.c.b16 %v2663, %v2661
    %v2758 = vpack.c.b16 %v2666, %v2664
    %v2759 = vpack.c.b16 %v2667, %v2665
    %v2760 = vpack.c.b16 %v2670, %v2668
    %v2761 = vpack.c.b16 %v2671, %v2669
    %v2762 = vpack.c.b16 %v2674, %v2672
    %v2763 = vpack.c.b16 %v2675, %v2673
    %v2764 = vpack.c.b16 %v2678, %v2676
    %v2765 = vpack.c.b16 %v2679, %v2677
    %v2766 = vpack.c.b16 %v2682, %v2680
    %v2767 = vpack.c.b16 %v2683, %v2681
    %v2768 = vpack.c.b16 %v2686, %v2684
    %v2769 = vpack.c.b16 %v2687, %v2685
    %v2770 = vpack.c.b16 %v2690, %v2688
    %v2771 = vpack.c.b16 %v2691, %v2689
    %v2772 = vpack.c.b16 %v2694, %v2692
    %v2773 = vpack.c.b16 %v2695, %v2693
    %v2774 = vpack.c.b16 %v2698, %v2696
    %v2775 = vpack.c.b16 %v2699, %v2697
    %v2776 = vpack.c.b16 %v2702, %v2700
    %v2777 = vpack.c.b16 %v2703, %v2701
    %v2778 = vpack.c.b16 %v2706, %v2704
    %v2779 = vpack.c.b16 %v2707, %v2705
    %v2780 = vpack.c.b16 %v2710, %v2708
    %v2781 = vpack.c.b16 %v2711, %v2709
    %v2782 = vpack.c.b16 %v2714, %v2712
    %v2783 = vpack.c.b16 %v2715, %v2713
    %v2784 = vpack.c.b16 %v2718, %v2716
    %v2785 = vpack.c.b16 %v2719, %v2717
    %v2786 = vpack.c.b16 %v2722, %v2720
    %v2787 = vpack.c.b16 %v2723, %v2721
    %2852 = vmatprep.subr.bf16.mxu0 %v2725
    %2853 = vmatpush1.bf16.msra.mxu0 %v2724
    %2854 = vmatprep.subr.bf16.mxu0 %v2727
    %2855 = vmatpush1.bf16.msra.mxu0 %v2726
    %2856 = vmatprep.subr.bf16.mxu0 %v2729
    %2857 = vmatpush1.bf16.msra.mxu0 %v2728
    %2858 = vmatprep.subr.bf16.mxu0 %v2731
    %2859 = vmatpush1.bf16.msra.mxu0 %v2730
    %2860 = vmatprep.subr.bf16.mxu0 %v2733
    %2861 = vmatpush1.bf16.msra.mxu0 %v2732
    %2862 = vmatprep.subr.bf16.mxu0 %v2735
    %2863 = vmatpush1.bf16.msra.mxu0 %v2734
    %2864 = vmatprep.subr.bf16.mxu0 %v2737
    %2865 = vmatpush1.bf16.msra.mxu0 %v2736
    %2866 = vmatprep.subr.bf16.mxu0 %v2739
    %2867 = vmatpush1.bf16.msra.mxu0 %v2738
    %2868 = vmatprep.subr.bf16.mxu0 %v2741
    %2869 = vmatpush1.bf16.msra.mxu0 %v2740
    %2870 = vmatprep.subr.bf16.mxu0 %v2743
    %2871 = vmatpush1.bf16.msra.mxu0 %v2742
    %2872 = vmatprep.subr.bf16.mxu0 %v2745
    %2873 = vmatpush1.bf16.msra.mxu0 %v2744
    %2874 = vmatprep.subr.bf16.mxu0 %v2747
    %2875 = vmatpush1.bf16.msra.mxu0 %v2746
    %2876 = vmatprep.subr.bf16.mxu0 %v2749
    %2877 = vmatpush1.bf16.msra.mxu0 %v2748
    %2878 = vmatprep.subr.bf16.mxu0 %v2751
    %2879 = vmatpush1.bf16.msra.mxu0 %v2750
    %2880 = vmatprep.subr.bf16.mxu0 %v2753
    %2881 = vmatpush1.bf16.msra.mxu0 %v2752
    %2882 = vmatprep.subr.bf16.mxu0 %v2755
    %2883 = vmatpush1.bf16.msra.mxu0 %v2754
    %2884 = vmatprep.mubr.bf16.mxu0 %v2425
    %2885 = vmatmul.mubr.bf16.gmra.mrb[0].mxu0 %v2424
    %v2886 = vpop.f32.mrb[0].mxu0
    %v2887 = vadd.f32 %v2525, %v2886
    %v2888 = vpop.f32.mrb[0].mxu0
    %v2889 = vadd.f32 %v2529, %v2888
    %v2890 = vpop.f32.mrb[0].mxu0
    %v2891 = vadd.f32 %v2525, %v2890
    %v2892 = vpop.f32.mrb[0].mxu0
    %v2893 = vadd.f32 %v2529, %v2892
    %2894 = vmatprep.mubr.bf16.mxu0 %v2429
    %2895 = vmatmul.mubr.bf16.gmra.mrb[0].mxu0 %v2428
    %v2896 = vpop.f32.mrb[0].mxu0
    %v2897 = vadd.f32 %v2525, %v2896
    %v2898 = vpop.f32.mrb[0].mxu0
    %v2899 = vadd.f32 %v2529, %v2898
    %v2900 = vpop.f32.mrb[0].mxu0
    %v2901 = vadd.f32 %v2525, %v2900
    %v2902 = vpop.f32.mrb[0].mxu0
    %v2903 = vadd.f32 %v2529, %v2902
    %2904 = vmatprep.mubr.bf16.mxu0 %v2433
    %2905 = vmatmul.mubr.bf16.gmra.mrb[0].mxu0 %v2432
    %v2906 = vpop.f32.mrb[0].mxu0
    %v2907 = vadd.f32 %v2525, %v2906
    %v2908 = vpop.f32.mrb[0].mxu0
    %v2909 = vadd.f32 %v2529, %v2908
    %v2910 = vpop.f32.mrb[0].mxu0
    %v2911 = vadd.f32 %v2525, %v2910
    %v2912 = vpop.f32.mrb[0].mxu0
    %v2913 = vadd.f32 %v2529, %v2912
    %2914 = vmatprep.mubr.bf16.mxu0 %v2437
    %2915 = vmatmul.mubr.bf16.gmra.mrb[0].mxu0 %v2436
    %v2916 = vpop.f32.mrb[0].mxu0
    %v2917 = vadd.f32 %v2525, %v2916
    %v2918 = vpop.f32.mrb[0].mxu0
    %v2919 = vadd.f32 %v2529, %v2918
    %v2920 = vpop.f32.mrb[0].mxu0
    %v2921 = vadd.f32 %v2525, %v2920
    %v2922 = vpop.f32.mrb[0].mxu0
    %v2923 = vadd.f32 %v2529, %v2922
    %2924 = vmatprep.mubr.bf16.mxu0 %v2441
    %2925 = vmatmul.mubr.bf16.gmra.mrb[0].mxu0 %v2440
    %v2926 = vpop.f32.mrb[0].mxu0
    %v2927 = vadd.f32 %v2525, %v2926
    %v2928 = vpop.f32.mrb[0].mxu0
    %v2929 = vadd.f32 %v2529, %v2928
    %v2930 = vpop.f32.mrb[0].mxu0
    %v2931 = vadd.f32 %v2525, %v2930
    %v2932 = vpop.f32.mrb[0].mxu0
    %v2933 = vadd.f32 %v2529, %v2932
    %2934 = vmatprep.mubr.bf16.mxu0 %v2445
    %2935 = vmatmul.mubr.bf16.gmra.mrb[0].mxu0 %v2444
    %v2936 = vpop.f32.mrb[0].mxu0
    %v2937 = vadd.f32 %v2525, %v2936
    %v2938 = vpop.f32.mrb[0].mxu0
    %v2939 = vadd.f32 %v2529, %v2938
    %v2940 = vpop.f32.mrb[0].mxu0
    %v2941 = vadd.f32 %v2525, %v2940
    %v2942 = vpop.f32.mrb[0].mxu0
    %v2943 = vadd.f32 %v2529, %v2942
    %2944 = vmatprep.mubr.bf16.mxu0 %v2449
    %2945 = vmatmul.mubr.bf16.gmra.mrb[0].mxu0 %v2448
    %v2946 = vpop.f32.mrb[0].mxu0
    %v2947 = vadd.f32 %v2525, %v2946
    %v2948 = vpop.f32.mrb[0].mxu0
    %v2949 = vadd.f32 %v2529, %v2948
    %v2950 = vpop.f32.mrb[0].mxu0
    %v2951 = vadd.f32 %v2525, %v2950
    %v2952 = vpop.f32.mrb[0].mxu0
    %v2953 = vadd.f32 %v2529, %v2952
    %2954 = vmatprep.mubr.bf16.mxu0 %v2453
    %2955 = vmatmul.mubr.bf16.gmra.mrb[0].mxu0 %v2452
    %v2956 = vpop.f32.mrb[0].mxu0
    %v2957 = vadd.f32 %v2525, %v2956
    %v2958 = vpop.f32.mrb[0].mxu0
    %v2959 = vadd.f32 %v2529, %v2958
    %v2960 = vpop.f32.mrb[0].mxu0
    %v2961 = vadd.f32 %v2525, %v2960
    %v2962 = vpop.f32.mrb[0].mxu0
    %v2963 = vadd.f32 %v2529, %v2962
    %2964 = vdwg.mxu0
    %2965 = vmatprep.subr.bf16.mxu0 %v2757
    %2966 = vmatpush1.bf16.msra.mxu0 %v2756
    %2967 = vmatprep.subr.bf16.mxu0 %v2759
    %2968 = vmatpush1.bf16.msra.mxu0 %v2758
    %2969 = vmatprep.subr.bf16.mxu0 %v2761
    %2970 = vmatpush1.bf16.msra.mxu0 %v2760
    %2971 = vmatprep.subr.bf16.mxu0 %v2763
    %2972 = vmatpush1.bf16.msra.mxu0 %v2762
    %2973 = vmatprep.subr.bf16.mxu0 %v2765
    %2974 = vmatpush1.bf16.msra.mxu0 %v2764
    %2975 = vmatprep.subr.bf16.mxu0 %v2767
    %2976 = vmatpush1.bf16.msra.mxu0 %v2766
    %2977 = vmatprep.subr.bf16.mxu0 %v2769
    %2978 = vmatpush1.bf16.msra.mxu0 %v2768
    %2979 = vmatprep.subr.bf16.mxu0 %v2771
    %2980 = vmatpush1.bf16.msra.mxu0 %v2770
    %2981 = vmatprep.subr.bf16.mxu0 %v2773
    %2982 = vmatpush1.bf16.msra.mxu0 %v2772
    %2983 = vmatprep.subr.bf16.mxu0 %v2775
    %2984 = vmatpush1.bf16.msra.mxu0 %v2774
    %2985 = vmatprep.subr.bf16.mxu0 %v2777
    %2986 = vmatpush1.bf16.msra.mxu0 %v2776
    %2987 = vmatprep.subr.bf16.mxu0 %v2779
    %2988 = vmatpush1.bf16.msra.mxu0 %v2778
    %2989 = vmatprep.subr.bf16.mxu0 %v2781
    %2990 = vmatpush1.bf16.msra.mxu0 %v2780
    %2991 = vmatprep.subr.bf16.mxu0 %v2783
    %2992 = vmatpush1.bf16.msra.mxu0 %v2782
    %2993 = vmatprep.subr.bf16.mxu0 %v2785
    %2994 = vmatpush1.bf16.msra.mxu0 %v2784
    %2995 = vmatprep.subr.bf16.mxu0 %v2787
    %2996 = vmatpush1.bf16.msra.mxu0 %v2786
    %2997 = vmatprep.mubr.bf16.mxu0 %v2427
    %2998 = vmatmul.mubr.bf16.gmra.mrb[0].mxu0 %v2426
    %v2999 = vpop.f32.mrb[0].mxu0
    %v3000 = vadd.f32 %v2887, %v2999
    %v3001 = vpop.f32.mrb[0].mxu0
    %v3002 = vadd.f32 %v2889, %v3001
    %v3003 = vpop.f32.mrb[0].mxu0
    %v3004 = vadd.f32 %v2891, %v3003
    %v3005 = vpop.f32.mrb[0].mxu0
    %v3006 = vadd.f32 %v2893, %v3005
    %3007 = vmatprep.mubr.bf16.mxu0 %v2431
    %3008 = vmatmul.mubr.bf16.gmra.mrb[0].mxu0 %v2430
    %v3009 = vpop.f32.mrb[0].mxu0
    %v3010 = vadd.f32 %v2897, %v3009
    %v3011 = vpop.f32.mrb[0].mxu0
    %v3012 = vadd.f32 %v2899, %v3011
    %v3013 = vpop.f32.mrb[0].mxu0
    %v3014 = vadd.f32 %v2901, %v3013
    %v3015 = vpop.f32.mrb[0].mxu0
    %v3016 = vadd.f32 %v2903, %v3015
    %3017 = vmatprep.mubr.bf16.mxu0 %v2435
    %3018 = vmatmul.mubr.bf16.gmra.mrb[0].mxu0 %v2434
    %v3019 = vpop.f32.mrb[0].mxu0
    %v3020 = vadd.f32 %v2907, %v3019
    %v3021 = vpop.f32.mrb[0].mxu0
    %v3022 = vadd.f32 %v2909, %v3021
    %v3023 = vpop.f32.mrb[0].mxu0
    %v3024 = vadd.f32 %v2911, %v3023
    %v3025 = vpop.f32.mrb[0].mxu0
    %v3026 = vadd.f32 %v2913, %v3025
    %3027 = vmatprep.mubr.bf16.mxu0 %v2439
    %3028 = vmatmul.mubr.bf16.gmra.mrb[0].mxu0 %v2438
    %v3029 = vpop.f32.mrb[0].mxu0
    %v3030 = vadd.f32 %v2917, %v3029
    %v3031 = vpop.f32.mrb[0].mxu0
    %v3032 = vadd.f32 %v2919, %v3031
    %v3033 = vpop.f32.mrb[0].mxu0
    %v3034 = vadd.f32 %v2921, %v3033
    %v3035 = vpop.f32.mrb[0].mxu0
    %v3036 = vadd.f32 %v2923, %v3035
    %3037 = vmatprep.mubr.bf16.mxu0 %v2443
    %3038 = vmatmul.mubr.bf16.gmra.mrb[0].mxu0 %v2442
    %v3039 = vpop.f32.mrb[0].mxu0
    %v3040 = vadd.f32 %v2927, %v3039
    %v3041 = vpop.f32.mrb[0].mxu0
    %v3042 = vadd.f32 %v2929, %v3041
    %v3043 = vpop.f32.mrb[0].mxu0
    %v3044 = vadd.f32 %v2931, %v3043
    %v3045 = vpop.f32.mrb[0].mxu0
    %v3046 = vadd.f32 %v2933, %v3045
    %3047 = vmatprep.mubr.bf16.mxu0 %v2447
    %3048 = vmatmul.mubr.bf16.gmra.mrb[0].mxu0 %v2446
    %v3049 = vpop.f32.mrb[0].mxu0
    %v3050 = vadd.f32 %v2937, %v3049
    %v3051 = vpop.f32.mrb[0].mxu0
    %v3052 = vadd.f32 %v2939, %v3051
    %v3053 = vpop.f32.mrb[0].mxu0
    %v3054 = vadd.f32 %v2941, %v3053
    %v3055 = vpop.f32.mrb[0].mxu0
    %v3056 = vadd.f32 %v2943, %v3055
    %3057 = vmatprep.mubr.bf16.mxu0 %v2451
    %3058 = vmatmul.mubr.bf16.gmra.mrb[0].mxu0 %v2450
    %v3059 = vpop.f32.mrb[0].mxu0
    %v3060 = vadd.f32 %v2947, %v3059
    %v3061 = vpop.f32.mrb[0].mxu0
    %v3062 = vadd.f32 %v2949, %v3061
    %v3063 = vpop.f32.mrb[0].mxu0
    %v3064 = vadd.f32 %v2951, %v3063
    %v3065 = vpop.f32.mrb[0].mxu0
    %v3066 = vadd.f32 %v2953, %v3065
    %3067 = vmatprep.mubr.bf16.mxu0 %v2455
    %3068 = vmatmul.mubr.bf16.gmra.mrb[0].mxu0 %v2454
    %v3069 = vpop.f32.mrb[0].mxu0
    %v3070 = vadd.f32 %v2957, %v3069
    %v3071 = vpop.f32.mrb[0].mxu0
    %v3072 = vadd.f32 %v2959, %v3071
    %v3073 = vpop.f32.mrb[0].mxu0
    %v3074 = vadd.f32 %v2961, %v3073
    %v3075 = vpop.f32.mrb[0].mxu0
    %v3076 = vadd.f32 %v2963, %v3075
    %3077 = vdwg.mxu0
    %v3078 = vmax.f32 %v3000, 0.0
    %v3079 = vmax.f32 %v3002, 0.0
    %v3080 = vmax.f32 %v3004, 0.0
    %v3081 = vmax.f32 %v3006, 0.0
    %v3082 = vmax.f32 %v3010, 0.0
    %v3083 = vmax.f32 %v3012, 0.0
    %v3084 = vmax.f32 %v3014, 0.0
    %v3085 = vmax.f32 %v3016, 0.0
    %v3086 = vmax.f32 %v3020, 0.0
    %v3087 = vmax.f32 %v3022, 0.0
    %v3088 = vmax.f32 %v3024, 0.0
    %v3089 = vmax.f32 %v3026, 0.0
    %v3090 = vmax.f32 %v3030, 0.0
    %v3091 = vmax.f32 %v3032, 0.0
    %v3092 = vmax.f32 %v3034, 0.0
    %v3093 = vmax.f32 %v3036, 0.0
    %v3094 = vmax.f32 %v3040, 0.0
    %v3095 = vmax.f32 %v3042, 0.0
    %v3096 = vmax.f32 %v3044, 0.0
    %v3097 = vmax.f32 %v3046, 0.0
    %v3098 = vmax.f32 %v3050, 0.0
    %v3099 = vmax.f32 %v3052, 0.0
    %v3100 = vmax.f32 %v3054, 0.0
    %v3101 = vmax.f32 %v3056, 0.0
    %v3102 = vmax.f32 %v3060, 0.0
    %v3103 = vmax.f32 %v3062, 0.0
    %v3104 = vmax.f32 %v3064, 0.0
    %v3105 = vmax.f32 %v3066, 0.0
    %v3106 = vmax.f32 %v3070, 0.0
    %v3107 = vmax.f32 %v3072, 0.0
    %v3108 = vmax.f32 %v3074, 0.0
    %v3109 = vmax.f32 %v3076, 0.0
    %v3110 = vpack.c.bf16 %v3080, %v3078
    %v3111 = vpack.c.bf16 %v3081, %v3079
    %v3112 = vpack.c.bf16 %v3084, %v3082
    %v3113 = vpack.c.bf16 %v3085, %v3083
    %v3114 = vpack.c.bf16 %v3088, %v3086
    %v3115 = vpack.c.bf16 %v3089, %v3087
    %v3116 = vpack.c.bf16 %v3092, %v3090
    %v3117 = vpack.c.bf16 %v3093, %v3091
    %v3118 = vpack.c.bf16 %v3096, %v3094
    %v3119 = vpack.c.bf16 %v3097, %v3095
    %v3120 = vpack.c.bf16 %v3100, %v3098
    %v3121 = vpack.c.bf16 %v3101, %v3099
    %v3122 = vpack.c.bf16 %v3104, %v3102
    %v3123 = vpack.c.bf16 %v3105, %v3103
    %v3124 = vpack.c.bf16 %v3108, %v3106
    %v3125 = vpack.c.bf16 %v3109, %v3107
    %v3126 = vld [vmem:[%s5] sm:$0xf]
    %v3127 = vld [vmem:[%s5 + $0x4] sm:$0xf]
    %v3128 = vld [vmem:[%s5 + $0x8] sm:$0xf]
    %v3129 = vld [vmem:[%s5 + $0xc] sm:$0xf]
    %v3130 = vld [vmem:[%s5 + $0x10] sm:$0xf]
    %v3131 = vld [vmem:[%s5 + $0x14] sm:$0xf]
    %v3132 = vld [vmem:[%s5 + $0x18] sm:$0xf]
    %v3133 = vld [vmem:[%s5 + $0x1c] sm:$0xf]
    %v3134 = vld [vmem:[%s5 + $0x20] sm:$0xf]
    %v3135 = vld [vmem:[%s5 + $0x24] sm:$0xf]
    %v3136 = vld [vmem:[%s5 + $0x28] sm:$0xf]
    %v3137 = vld [vmem:[%s5 + $0x2c] sm:$0xf]
    %v3138 = vld [vmem:[%s5 + $0x30] sm:$0xf]
    %v3139 = vld [vmem:[%s5 + $0x34] sm:$0xf]
    %v3140 = vld [vmem:[%s5 + $0x38] sm:$0xf]
    %v3141 = vld [vmem:[%s5 + $0x3c] sm:$0xf]
    %v3142 = vld [vmem:[%s5 + $0x40] sm:$0xf]
    %v3143 = vld [vmem:[%s5 + $0x44] sm:$0xf]
    %v3144 = vld [vmem:[%s5 + $0x48] sm:$0xf]
    %v3145 = vld [vmem:[%s5 + $0x4c] sm:$0xf]
    %v3146 = vld [vmem:[%s5 + $0x50] sm:$0xf]
    %v3147 = vld [vmem:[%s5 + $0x54] sm:$0xf]
    %v3148 = vld [vmem:[%s5 + $0x58] sm:$0xf]
    %v3149 = vld [vmem:[%s5 + $0x5c] sm:$0xf]
    %v3150 = vld [vmem:[%s5 + $0x60] sm:$0xf]
    %v3151 = vld [vmem:[%s5 + $0x64] sm:$0xf]
    %v3152 = vld [vmem:[%s5 + $0x68] sm:$0xf]
    %v3153 = vld [vmem:[%s5 + $0x6c] sm:$0xf]
    %v3154 = vld [vmem:[%s5 + $0x70] sm:$0xf]
    %v3155 = vld [vmem:[%s5 + $0x74] sm:$0xf]
    %v3156 = vld [vmem:[%s5 + $0x78] sm:$0xf]
    %v3157 = vld [vmem:[%s5 + $0x7c] sm:$0xf]
    %v3158 = vld [vmem:[#allocation7] sm:$0x1]
    %v3160 = vlaneseq
    %v3161 = vshrl.u32 %v3160, 7
    %v3162 = vsub.s32 0, %v3161
    %v3163 = vrot.slane %v3158, %v3162
    %v3197 = vunpack.c.l.b16 %v3126
    %v3198 = vunpack.c.l.b16 %v3127
    %v3199 = vunpack.c.l.b16 %v3128
    %v3200 = vunpack.c.l.b16 %v3129
    %v3201 = vunpack.c.l.b16 %v3130
    %v3202 = vunpack.c.l.b16 %v3131
    %v3203 = vunpack.c.l.b16 %v3132
    %v3204 = vunpack.c.l.b16 %v3133
    %v3205 = vunpack.c.l.b16 %v3134
    %v3206 = vunpack.c.l.b16 %v3135
    %v3207 = vunpack.c.l.b16 %v3136
    %v3208 = vunpack.c.l.b16 %v3137
    %v3209 = vunpack.c.l.b16 %v3138
    %v3210 = vunpack.c.l.b16 %v3139
    %v3211 = vunpack.c.l.b16 %v3140
    %v3212 = vunpack.c.l.b16 %v3141
    %v3213 = vunpack.c.l.b16 %v3142
    %v3214 = vunpack.c.l.b16 %v3143
    %v3215 = vunpack.c.l.b16 %v3144
    %v3216 = vunpack.c.l.b16 %v3145
    %v3217 = vunpack.c.l.b16 %v3146
    %v3218 = vunpack.c.l.b16 %v3147
    %v3219 = vunpack.c.l.b16 %v3148
    %v3220 = vunpack.c.l.b16 %v3149
    %v3221 = vunpack.c.l.b16 %v3150
    %v3222 = vunpack.c.l.b16 %v3151
    %v3223 = vunpack.c.l.b16 %v3152
    %v3224 = vunpack.c.l.b16 %v3153
    %v3225 = vunpack.c.l.b16 %v3154
    %v3226 = vunpack.c.l.b16 %v3155
    %v3227 = vunpack.c.l.b16 %v3156
    %v3228 = vunpack.c.l.b16 %v3157
    %v3229 = vpack.c.b16 %v3198, %v3197
    %v3230 = vpack.c.b16 %v3200, %v3199
    %v3231 = vpack.c.b16 %v3202, %v3201
    %v3232 = vpack.c.b16 %v3204, %v3203
    %v3233 = vpack.c.b16 %v3206, %v3205
    %v3234 = vpack.c.b16 %v3208, %v3207
    %v3235 = vpack.c.b16 %v3210, %v3209
    %v3236 = vpack.c.b16 %v3212, %v3211
    %v3237 = vpack.c.b16 %v3214, %v3213
    %v3238 = vpack.c.b16 %v3216, %v3215
    %v3239 = vpack.c.b16 %v3218, %v3217
    %v3240 = vpack.c.b16 %v3220, %v3219
    %v3241 = vpack.c.b16 %v3222, %v3221
    %v3242 = vpack.c.b16 %v3224, %v3223
    %v3243 = vpack.c.b16 %v3226, %v3225
    %v3244 = vpack.c.b16 %v3228, %v3227
    %3261 = vmatprep.subr.bf16.mxu0 0
    %3262 = vmatpush1.bf16.msra.mxu0 %v3229
    %3263 = vmatprep.subr.bf16.mxu0 0
    %3264 = vmatpush1.bf16.msra.mxu0 %v3230
    %3265 = vmatprep.subr.bf16.mxu0 0
    %3266 = vmatpush1.bf16.msra.mxu0 %v3231
    %3267 = vmatprep.subr.bf16.mxu0 0
    %3268 = vmatpush1.bf16.msra.mxu0 %v3232
    %3269 = vmatprep.subr.bf16.mxu0 0
    %3270 = vmatpush1.bf16.msra.mxu0 %v3233
    %3271 = vmatprep.subr.bf16.mxu0 0
    %3272 = vmatpush1.bf16.msra.mxu0 %v3234
    %3273 = vmatprep.subr.bf16.mxu0 0
    %3274 = vmatpush1.bf16.msra.mxu0 %v3235
    %3275 = vmatprep.subr.bf16.mxu0 0
    %3276 = vmatpush1.bf16.msra.mxu0 %v3236
    %3277 = vmatprep.subr.bf16.mxu0 0
    %3278 = vmatpush1.bf16.msra.mxu0 %v3237
    %3279 = vmatprep.subr.bf16.mxu0 0
    %3280 = vmatpush1.bf16.msra.mxu0 %v3238
    %3281 = vmatprep.subr.bf16.mxu0 0
    %3282 = vmatpush1.bf16.msra.mxu0 %v3239
    %3283 = vmatprep.subr.bf16.mxu0 0
    %3284 = vmatpush1.bf16.msra.mxu0 %v3240
    %3285 = vmatprep.subr.bf16.mxu0 0
    %3286 = vmatpush1.bf16.msra.mxu0 %v3241
    %3287 = vmatprep.subr.bf16.mxu0 0
    %3288 = vmatpush1.bf16.msra.mxu0 %v3242
    %3289 = vmatprep.subr.bf16.mxu0 0
    %3290 = vmatpush1.bf16.msra.mxu0 %v3243
    %3291 = vmatprep.subr.bf16.mxu0 0
    %3292 = vmatpush1.bf16.msra.mxu0 %v3244
    %3293 = vmatprep.mubr.bf16.mxu0 %v3111
    %3294 = vmatmul.mubr.bf16.gmra.mrb[0].mxu0 %v3110
    %v3295 = vpop.f32.mrb[0].mxu0
    %v3296 = vadd.f32 %v3163, %v3295
    %v3297 = vpop.f32.mrb[0].mxu0
    %v3298 = vpop.f32.mrb[0].mxu0
    %v3299 = vadd.f32 %v3163, %v3298
    %v3300 = vpop.f32.mrb[0].mxu0
    %3301 = vmatprep.mubr.bf16.mxu0 %v3113
    %3302 = vmatmul.mubr.bf16.gmra.mrb[0].mxu0 %v3112
    %v3303 = vpop.f32.mrb[0].mxu0
    %v3304 = vadd.f32 %v3163, %v3303
    %v3305 = vpop.f32.mrb[0].mxu0
    %v3306 = vpop.f32.mrb[0].mxu0
    %v3307 = vadd.f32 %v3163, %v3306
    %v3308 = vpop.f32.mrb[0].mxu0
    %3309 = vmatprep.mubr.bf16.mxu0 %v3115
    %3310 = vmatmul.mubr.bf16.gmra.mrb[0].mxu0 %v3114
    %v3311 = vpop.f32.mrb[0].mxu0
    %v3312 = vadd.f32 %v3163, %v3311
    %v3313 = vpop.f32.mrb[0].mxu0
    %v3314 = vpop.f32.mrb[0].mxu0
    %v3315 = vadd.f32 %v3163, %v3314
    %v3316 = vpop.f32.mrb[0].mxu0
    %3317 = vmatprep.mubr.bf16.mxu0 %v3117
    %3318 = vmatmul.mubr.bf16.gmra.mrb[0].mxu0 %v3116
    %v3319 = vpop.f32.mrb[0].mxu0
    %v3320 = vadd.f32 %v3163, %v3319
    %v3321 = vpop.f32.mrb[0].mxu0
    %v3322 = vpop.f32.mrb[0].mxu0
    %v3323 = vadd.f32 %v3163, %v3322
    %v3324 = vpop.f32.mrb[0].mxu0
    %3325 = vmatprep.mubr.bf16.mxu0 %v3119
    %3326 = vmatmul.mubr.bf16.gmra.mrb[0].mxu0 %v3118
    %v3327 = vpop.f32.mrb[0].mxu0
    %v3328 = vadd.f32 %v3163, %v3327
    %v3329 = vpop.f32.mrb[0].mxu0
    %v3330 = vpop.f32.mrb[0].mxu0
    %v3331 = vadd.f32 %v3163, %v3330
    %v3332 = vpop.f32.mrb[0].mxu0
    %3333 = vmatprep.mubr.bf16.mxu0 %v3121
    %3334 = vmatmul.mubr.bf16.gmra.mrb[0].mxu0 %v3120
    %v3335 = vpop.f32.mrb[0].mxu0
    %v3336 = vadd.f32 %v3163, %v3335
    %v3337 = vpop.f32.mrb[0].mxu0
    %v3338 = vpop.f32.mrb[0].mxu0
    %v3339 = vadd.f32 %v3163, %v3338
    %v3340 = vpop.f32.mrb[0].mxu0
    %3341 = vmatprep.mubr.bf16.mxu0 %v3123
    %3342 = vmatmul.mubr.bf16.gmra.mrb[0].mxu0 %v3122
    %v3343 = vpop.f32.mrb[0].mxu0
    %v3344 = vadd.f32 %v3163, %v3343
    %v3345 = vpop.f32.mrb[0].mxu0
    %v3346 = vpop.f32.mrb[0].mxu0
    %v3347 = vadd.f32 %v3163, %v3346
    %v3348 = vpop.f32.mrb[0].mxu0
    %3349 = vmatprep.mubr.bf16.mxu0 %v3125
    %3350 = vmatmul.mubr.bf16.gmra.mrb[0].mxu0 %v3124
    %v3351 = vpop.f32.mrb[0].mxu0
    %v3352 = vadd.f32 %v3163, %v3351
    %v3353 = vpop.f32.mrb[0].mxu0
    %v3354 = vpop.f32.mrb[0].mxu0
    %v3355 = vadd.f32 %v3163, %v3354
    %v3356 = vpop.f32.mrb[0].mxu0
    %3357 = vdwg.mxu0
    %3358 = vst [vmem:[#allocation8] sm:$0xff] %v3296
    %3359 = vst [vmem:[#allocation8 + $0x8] sm:$0xff] %v3299
    %3360 = vst [vmem:[#allocation8 + $0x10] sm:$0xff] %v3304
    %3361 = vst [vmem:[#allocation8 + $0x18] sm:$0xff] %v3307
    %3362 = vst [vmem:[#allocation8 + $0x20] sm:$0xff] %v3312
    %3363 = vst [vmem:[#allocation8 + $0x28] sm:$0xff] %v3315
    %3364 = vst [vmem:[#allocation8 + $0x30] sm:$0xff] %v3320
    %3365 = vst [vmem:[#allocation8 + $0x38] sm:$0xff] %v3323
    %3366 = vst [vmem:[#allocation8 + $0x40] sm:$0xff] %v3328
    %3367 = vst [vmem:[#allocation8 + $0x48] sm:$0xff] %v3331
    %3368 = vst [vmem:[#allocation8 + $0x50] sm:$0xff] %v3336
    %3369 = vst [vmem:[#allocation8 + $0x58] sm:$0xff] %v3339
    %3370 = vst [vmem:[#allocation8 + $0x60] sm:$0xff] %v3344
    %3371 = vst [vmem:[#allocation8 + $0x68] sm:$0xff] %v3347
    %3372 = vst [vmem:[#allocation8 + $0x70] sm:$0xff] %v3352
    %3373 = vst [vmem:[#allocation8 + $0x78] sm:$0xff] %v3355
    // Predicated region
    $region42: #{tpu_custom_call.1} parent=1 // pred_check
      _
    $region43: #{tpu_custom_call.1} parent=1 // pred_check_branch
      %3375 = sbr.rel (0) target = $region45
    $region44: #{tpu_custom_call.1} parent=1 // pred_region
      %s3377 = ssub.s32 2048, 2048
      %3378 = vsyncadd [#allocation4], %s3377
      %s3379 = sshll.u32 [#allocation8], 4
      %s3380 = int_to_ptr.vmem [resolvable:$true] %s3379
      %3385 = dma.vmem_to_hbm [thread:$0]  %s3380, 2048, %s7, [#allocation4], 128, 128, 8
    $region45: #{tpu_custom_call.1} parent=1 // pred_fallthru
      _
    // Predicated region
    $region46: #{tpu_custom_call.1} parent=1 // pred_check
      _
    $region47: #{tpu_custom_call.1} parent=1 // pred_check_branch
      %3387 = sbr.rel (0) target = $region49
    $region48: #{tpu_custom_call.1} parent=1 // pred_region
      %3388 = dma.done [#allocation4], 2048
    $region49: #{tpu_custom_call.1} parent=1 // pred_fallthru
      _
    %3389 = vsyncpa [#allocation3], 1
    %3390 = vsyncpa [#allocation6], 1
    %3391 = vsyncpa [#allocation4], 1

</llo_original>
